<compile_context>
chip_gen: v7x
topology: tpu7x:2x2x1
jax: 0.10.0
libtpu: 0.0.40
codegen_flags: <defaults>
</compile_context>

<pallas_src>
import functools

import jax
import jax.numpy as jnp
from jax import lax
from jax.experimental import pallas as pl
from jax.experimental.pallas import tpu as pltpu


# --------------------------------------------------------------------------
# Fused Pallas kernel (one batch element per grid step)
# --------------------------------------------------------------------------
def _fused_kernel(x_ref, *refs, H, W, stride, use_res, has_expand):
    if has_expand:
        we_ref, be_ref, tap_ref, mask_ref, bd_ref, wp_ref, bp_ref, o_ref = refs
    else:
        tap_ref, mask_ref, bd_ref, wp_ref, bp_ref, o_ref = refs
        we_ref = be_ref = None

    HW = H * W
    Ho = (H - 1) // stride + 1

    x = x_ref[0]                                   # (Cin, H*W) channel-major, lane-dense

    # ---- 1x1 expand + folded BN + ReLU6 (MXU: bf16 operands, f32 accumulate) ----
    if has_expand:
        h = jnp.dot(we_ref[...], x.astype(we_ref.dtype),
                    preferred_element_type=jnp.float32)            # (hidden, H*W)
        h = jnp.clip(h + be_ref[...], 0.0, 6.0)
    else:
        h = x.astype(jnp.float32)                  # hidden == inp

    # ---- 3x3 depthwise (pad=1) + folded BN + ReLU6: lane rolls * precomputed masks ----
    # Depthwise math stays f32 (v5e VPU has no bf16).  Per tap: roll (XLU) + 2 VPU muls.
    acc = jnp.zeros(h.shape, jnp.float32)
    for k in range(9):
        dr, dc = k // 3 - 1, k % 3 - 1
        shift = dr * W + dc
        shifted = pltpu.roll(h, (-shift) % HW, axis=1) if shift else h
        if shift:                                  # center tap mask is all-ones -> skip
            shifted = shifted * mask_ref[k]        # (1, H*W) zero-padding mask
        acc = acc + shifted * tap_ref[k]           # (hidden, 1) tap, lane splat
    d = jnp.clip(acc + bd_ref[...], 0.0, 6.0)      # (hidden, H*W)

    # ---- stride=2: keep even output ROWS before projecting (halves project FLOPs and
    #      HBM writeback; output stays lane-dense).  Columns are subsampled in the wrapper.
    if stride > 1:
        d = jnp.concatenate(
            [d[:, (stride * i) * W:(stride * i + 1) * W] for i in range(Ho)],
            axis=1)                                # (hidden, Ho*W)

    # ---- 1x1 project + folded BN (+ residual), channel-major output (MXU) ----
    y = jnp.dot(wp_ref[...], d.astype(wp_ref.dtype),
                preferred_element_type=jnp.float32) + bp_ref[...]  # (oup, Ho*W)
    if use_res:                                    # only possible when stride == 1
        y = y + x

    o_ref[0] = y.astype(o_ref.dtype)


# --------------------------------------------------------------------------
# Wrapper: BN folding, weight pre-cast, mask precompute, single pallas_call
# --------------------------------------------------------------------------
def _fold_bn(gamma, beta, mean, var, eps=1e-5):
    scale = gamma / jnp.sqrt(var + eps)
    shift = beta - mean * scale
    return scale, shift


def _dw_masks(H, W):
    """Zero-padding validity masks for the 9 depthwise taps, shape (9, 1, H*W) f32."""
    HW = H * W
    pos = jnp.arange(HW, dtype=jnp.int32)
    row, col = pos // W, pos % W
    ms = []
    for ki in range(3):
        for kj in range(3):
            dr, dc = ki - 1, kj - 1
            ms.append(((row + dr >= 0) & (row + dr < H) &
                       (col + dc >= 0) & (col + dc < W)).astype(jnp.float32))
    return jnp.stack(ms).reshape(9, 1, HW)


def inverted_residual_forward(x_nchw, params, *, inp, oup, stride, expand_ratio,
                              matmul_dtype=jnp.bfloat16):
    assert stride in (1, 2)
    N, Cin, H, W = x_nchw.shape
    assert Cin == inp
    hidden = int(round(inp * expand_ratio))
    has_expand = expand_ratio != 1
    use_res = (stride == 1) and (inp == oup)
    Ho = (H - 1) // stride + 1
    HW = H * W
    HW_out = Ho * W                    # kernel output columns (col subsample in wrapper)

    wdt = jnp.float32 if matmul_dtype is None else matmul_dtype

    # Fold BN into conv weights/bias (inference form); pre-cast MXU weights once.
    args = []
    if has_expand:
        s1, t1 = _fold_bn(*params["bn1"])
        args += [(params["w_expand"] * s1[:, None]).astype(wdt),      # (hidden, inp)
                 t1[:, None].astype(jnp.float32)]                     # (hidden, 1)
    s2, t2 = _fold_bn(*params["bn2"])
    taps = jnp.transpose((params["w_dw"] * s2[:, None, None]).reshape(hidden, 9))
    args += [taps[:, :, None].astype(jnp.float32),                    # (9, hidden, 1)
             _dw_masks(H, W),                                         # (9, 1, H*W)
             t2[:, None].astype(jnp.float32)]                         # (hidden, 1)
    s3, t3 = _fold_bn(*params["bn3"])
    args += [(params["w_proj"] * s3[:, None]).astype(wdt),            # (oup, hidden)
             t3[:, None].astype(jnp.float32)]                         # (oup, 1)

    x2d = x_nchw.reshape(N, Cin, HW)   # free reshape: NCHW is already channel-major

    kernel = functools.partial(_fused_kernel, H=H, W=W, stride=stride,
                               use_res=use_res, has_expand=has_expand)

    in_specs = [pl.BlockSpec((1, Cin, HW), lambda n: (n, 0, 0))]
    for a in args:                     # small params: full-array blocks, VMEM-resident
        in_specs.append(pl.BlockSpec(a.shape, lambda n, r=a.ndim: (0,) * r))

    flops = (2 * N * HW * hidden * ((inp if has_expand else 0) + 9)
             + 2 * N * HW_out * hidden * oup)
    bytes_accessed = (x2d.size * x2d.dtype.itemsize
                      + N * oup * HW_out * x_nchw.dtype.itemsize
                      + sum(int(a.size) * a.dtype.itemsize for a in args))

    out = pl.pallas_call(
        kernel,
        out_shape=jax.ShapeDtypeStruct((N, oup, HW_out), x_nchw.dtype),
        grid=(N,),
        in_specs=in_specs,
        out_specs=pl.BlockSpec((1, oup, HW_out), lambda n: (n, 0, 0)),
        compiler_params=pltpu.CompilerParams(
            dimension_semantics=("parallel",),
            vmem_limit_bytes=48 * 1024 * 1024),
        cost_estimate=pl.CostEstimate(flops=flops, transcendentals=0,
                                      bytes_accessed=bytes_accessed),
    )(x2d, *args)

    out = out.reshape(N, oup, Ho, W)   # free: already channel/row-major ordered
    if stride > 1:
        out = out[:, :, :, ::stride]   # cheap XLA column subsample of the small output
    return out


# --------------------------------------------------------------------------
# Parameters (PyTorch layout) and an independent pure-JAX reference (lax.conv)
# --------------------------------------------------------------------------
def _bn_params(key, c):
    k1, k2, k3, k4 = jax.random.split(key, 4)
    gamma = jax.random.uniform(k1, (c,), jnp.float32, 0.5, 1.5)
    beta = 0.1 * jax.random.normal(k2, (c,), jnp.float32)
    mean = 0.1 * jax.random.normal(k3, (c,), jnp.float32)
    var = jax.random.uniform(k4, (c,), jnp.float32, 0.5, 1.5)
    return gamma, beta, mean, var


def init_inverted_residual(key, inp, oup, expand_ratio):
    hidden = int(round(inp * expand_ratio))
    ks = jax.random.split(key, 6)
    params = {}
    if expand_ratio != 1:
        params["w_expand"] = 0.1 * jax.random.normal(ks[0], (hidden, inp), jnp.float32)
        params["bn1"] = _bn_params(ks[1], hidden)
    params["w_dw"] = 0.1 * jax.random.normal(ks[2], (hidden, 3, 3), jnp.float32)
    params["bn2"] = _bn_params(ks[3], hidden)
    params["w_proj"] = 0.1 * jax.random.normal(ks[4], (oup, hidden), jnp.float32)
    params["bn3"] = _bn_params(ks[5], oup)
    return params


def _bn_inference(y, bn, eps=1e-5):
    gamma, beta, mean, var = bn
    inv = gamma / jnp.sqrt(var + eps)
    return (y - mean[None, :, None, None]) * inv[None, :, None, None] \
        + beta[None, :, None, None]


def _ref_forward(x, params, *, inp, oup, stride, expand_ratio):
    hidden = int(round(inp * expand_ratio))
    dn = ("NCHW", "OIHW", "NCHW")
    h = x
    if expand_ratio != 1:
        h = lax.conv_general_dilated(h, params["w_expand"][:, :, None, None],
                                     (1, 1), "VALID", dimension_numbers=dn)
        h = jnp.clip(_bn_inference(h, params["bn1"]), 0.0, 6.0)
    h = lax.conv_general_dilated(h, params["w_dw"][:, None, :, :],
                                 (stride, stride), [(1, 1), (1, 1)],
                                 dimension_numbers=dn, feature_group_count=hidden)
    h = jnp.clip(_bn_inference(h, params["bn2"]), 0.0, 6.0)
    h = lax.conv_general_dilated(h, params["w_proj"][:, :, None, None],
                                 (1, 1), "VALID", dimension_numbers=dn)
    h = _bn_inference(h, params["bn3"])
    if stride == 1 and inp == oup:
        h = h + x
    return h


# --------------------------------------------------------------------------
if __name__ == "__main__":
    key = jax.random.PRNGKey(0)

    configs = [
        # (inp, oup, stride, expand_ratio, N, H, W)
        (8, 8, 1, 4, 2, 16, 16),     # residual path (stride=1, inp==oup)
        (8, 16, 2, 6, 2, 16, 16),    # stride=2, no residual
        (16, 16, 1, 1, 2, 16, 16),   # expand_ratio=1 (no expand conv), residual
    ]
    for i, (inp, oup, stride, er, N, H, W) in enumerate(configs):
        kx, kp, key = jax.random.split(key, 3)
        x = jax.random.normal(kx, (N, inp, H, W), jnp.float32)   # NCHW like PyTorch
        params = init_inverted_residual(kp, inp, oup, er)
        ref = _ref_forward(x, params, inp=inp, oup=oup, stride=stride, expand_ratio=er)

        # Default path: bf16 MXU operands, f32 accumulation / f32 depthwise.
        out = jax.block_until_ready(inverted_residual_forward(
            x, params, inp=inp, oup=oup, stride=stride, expand_ratio=er))
        assert out.shape == ref.shape, (out.shape, ref.shape)
        err = float(jnp.max(jnp.abs(out - ref)))
        assert err < 5e-2, f"config {i} (bf16): max abs err {err}"

        # Full-f32 path for a tight numerical check.
        out_f32 = jax.block_until_ready(inverted_residual_forward(
            x, params, inp=inp, oup=oup, stride=stride, expand_ratio=er,
            matmul_dtype=None))
        err = float(jnp.max(jnp.abs(out_f32 - ref)))
        assert err < 1e-4, f"config {i} (f32): max abs err {err}"

    print("KERNEL_OK")
</pallas_src>

<mosaic_0001>
module attributes {stable_mosaic.version = 11 : i64} {
  func.func @_fused_kernel(%arg0: i32, %arg1: memref<1x8x256xf32, #tpu.memory_space<vmem>>, %arg2: memref<32x8xbf16, #tpu.memory_space<vmem>>, %arg3: memref<32x1xf32, #tpu.memory_space<vmem>>, %arg4: memref<9x32x1xf32, #tpu.memory_space<vmem>>, %arg5: memref<9x1x256xf32, #tpu.memory_space<vmem>>, %arg6: memref<32x1xf32, #tpu.memory_space<vmem>>, %arg7: memref<8x32xbf16, #tpu.memory_space<vmem>>, %arg8: memref<8x1xf32, #tpu.memory_space<vmem>>, %arg9: memref<1x8x256xf32, #tpu.memory_space<vmem>>) attributes {dimension_semantics = [#tpu.dimension_semantics<parallel>], iteration_bounds = array<i64: 2>, scalar_prefetch = 0 : i64, scratch_operands = 0 : i64, tpu.core_type = #tpu.core_type<tc>, window_params = [{transform_indices = @transform_0, window_bounds = array<i64: 1, 8, 256>}, {pipeline_mode = #tpu.pipeline_mode<synchronous>, transform_indices = @transform_1, window_bounds = array<i64: 32, 8>}, {pipeline_mode = #tpu.pipeline_mode<synchronous>, transform_indices = @transform_2, window_bounds = array<i64: 32, 1>}, {pipeline_mode = #tpu.pipeline_mode<synchronous>, transform_indices = @transform_3, window_bounds = array<i64: 9, 32, 1>}, {pipeline_mode = #tpu.pipeline_mode<synchronous>, transform_indices = @transform_4, window_bounds = array<i64: 9, 1, 256>}, {pipeline_mode = #tpu.pipeline_mode<synchronous>, transform_indices = @transform_5, window_bounds = array<i64: 32, 1>}, {pipeline_mode = #tpu.pipeline_mode<synchronous>, transform_indices = @transform_6, window_bounds = array<i64: 8, 32>}, {pipeline_mode = #tpu.pipeline_mode<synchronous>, transform_indices = @transform_7, window_bounds = array<i64: 8, 1>}, {transform_indices = @transform_8, window_bounds = array<i64: 1, 8, 256>}]} {
    %c0 = arith.constant 0 : index
    %c0_0 = arith.constant 0 : index
    %c0_1 = arith.constant 0 : index
    %0 = vector.load %arg1[%c0, %c0_0, %c0_1] : memref<1x8x256xf32, #tpu.memory_space<vmem>>, vector<1x8x256xf32>
    %1 = vector.shape_cast %0 : vector<1x8x256xf32> to vector<8x256xf32>
    %c0_2 = arith.constant 0 : index
    %c0_3 = arith.constant 0 : index
    %2 = vector.load %arg2[%c0_2, %c0_3] : memref<32x8xbf16, #tpu.memory_space<vmem>>, vector<32x8xbf16>
    %3 = arith.truncf %1 : vector<8x256xf32> to vector<8x256xbf16>
    %cst = arith.constant dense<0.000000e+00> : vector<32x256xf32>
    %4 = tpu.matmul %2, %3, %cst {dimension_numbers = #tpu.dot_dimension_numbers<[1], [0], [0], [1], [0, 0, 1, 1], [], []>} : vector<32x8xbf16>, vector<8x256xbf16>, vector<32x256xf32> -> vector<32x256xf32>
    %c0_4 = arith.constant 0 : index
    %c0_5 = arith.constant 0 : index
    %5 = vector.load %arg3[%c0_4, %c0_5] : memref<32x1xf32, #tpu.memory_space<vmem>>, vector<32x1xf32>
    %6 = vector.broadcast %5 : vector<32x1xf32> to vector<32x256xf32>
    %7 = arith.addf %4, %6 : vector<32x256xf32>
    %cst_6 = arith.constant 0.000000e+00 : f32
    %cst_7 = arith.constant 6.000000e+00 : f32
    %8 = vector.broadcast %cst_6 : f32 to vector<32x256xf32>
    %9 = arith.maximumf %8, %7 : vector<32x256xf32>
    %10 = vector.broadcast %cst_7 : f32 to vector<32x256xf32>
    %11 = arith.minimumf %10, %9 : vector<32x256xf32>
    %cst_8 = arith.constant 0.000000e+00 : f32
    %12 = vector.broadcast %cst_8 : f32 to vector<32x256xf32>
    %c17_i32 = arith.constant 17 : i32
    %13 = tpu.dynamic_rotate %11 by %c17_i32 dim 1 : vector<32x256xf32>, i32 -> vector<32x256xf32>
    %c0_9 = arith.constant 0 : index
    %c0_10 = arith.constant 0 : index
    %c0_11 = arith.constant 0 : index
    %14 = vector.load %arg5[%c0_9, %c0_10, %c0_11] : memref<9x1x256xf32, #tpu.memory_space<vmem>>, vector<1x1x256xf32>
    %15 = vector.shape_cast %14 : vector<1x1x256xf32> to vector<1x256xf32>
    %16 = vector.broadcast %15 : vector<1x256xf32> to vector<32x256xf32>
    %17 = arith.mulf %13, %16 : vector<32x256xf32>
    %c0_12 = arith.constant 0 : index
    %c0_13 = arith.constant 0 : index
    %c0_14 = arith.constant 0 : index
    %18 = vector.load %arg4[%c0_12, %c0_13, %c0_14] : memref<9x32x1xf32, #tpu.memory_space<vmem>>, vector<1x32x1xf32>
    %19 = vector.shape_cast %18 : vector<1x32x1xf32> to vector<32x1xf32>
    %20 = vector.broadcast %19 : vector<32x1xf32> to vector<32x256xf32>
    %21 = arith.mulf %17, %20 : vector<32x256xf32>
    %22 = arith.addf %12, %21 : vector<32x256xf32>
    %c16_i32 = arith.constant 16 : i32
    %23 = tpu.dynamic_rotate %11 by %c16_i32 dim 1 : vector<32x256xf32>, i32 -> vector<32x256xf32>
    %c1 = arith.constant 1 : index
    %c0_15 = arith.constant 0 : index
    %c0_16 = arith.constant 0 : index
    %24 = vector.load %arg5[%c1, %c0_15, %c0_16] : memref<9x1x256xf32, #tpu.memory_space<vmem>>, vector<1x1x256xf32>
    %25 = vector.shape_cast %24 : vector<1x1x256xf32> to vector<1x256xf32>
    %26 = vector.broadcast %25 : vector<1x256xf32> to vector<32x256xf32>
    %27 = arith.mulf %23, %26 : vector<32x256xf32>
    %c1_17 = arith.constant 1 : index
    %c0_18 = arith.constant 0 : index
    %c0_19 = arith.constant 0 : index
    %28 = vector.load %arg4[%c1_17, %c0_18, %c0_19] : memref<9x32x1xf32, #tpu.memory_space<vmem>>, vector<1x32x1xf32>
    %29 = vector.shape_cast %28 : vector<1x32x1xf32> to vector<32x1xf32>
    %30 = vector.broadcast %29 : vector<32x1xf32> to vector<32x256xf32>
    %31 = arith.mulf %27, %30 : vector<32x256xf32>
    %32 = arith.addf %22, %31 : vector<32x256xf32>
    %c15_i32 = arith.constant 15 : i32
    %33 = tpu.dynamic_rotate %11 by %c15_i32 dim 1 : vector<32x256xf32>, i32 -> vector<32x256xf32>
    %c2 = arith.constant 2 : index
    %c0_20 = arith.constant 0 : index
    %c0_21 = arith.constant 0 : index
    %34 = vector.load %arg5[%c2, %c0_20, %c0_21] : memref<9x1x256xf32, #tpu.memory_space<vmem>>, vector<1x1x256xf32>
    %35 = vector.shape_cast %34 : vector<1x1x256xf32> to vector<1x256xf32>
    %36 = vector.broadcast %35 : vector<1x256xf32> to vector<32x256xf32>
    %37 = arith.mulf %33, %36 : vector<32x256xf32>
    %c2_22 = arith.constant 2 : index
    %c0_23 = arith.constant 0 : index
    %c0_24 = arith.constant 0 : index
    %38 = vector.load %arg4[%c2_22, %c0_23, %c0_24] : memref<9x32x1xf32, #tpu.memory_space<vmem>>, vector<1x32x1xf32>
    %39 = vector.shape_cast %38 : vector<1x32x1xf32> to vector<32x1xf32>
    %40 = vector.broadcast %39 : vector<32x1xf32> to vector<32x256xf32>
    %41 = arith.mulf %37, %40 : vector<32x256xf32>
    %42 = arith.addf %32, %41 : vector<32x256xf32>
    %c1_i32 = arith.constant 1 : i32
    %43 = tpu.dynamic_rotate %11 by %c1_i32 dim 1 : vector<32x256xf32>, i32 -> vector<32x256xf32>
    %c3 = arith.constant 3 : index
    %c0_25 = arith.constant 0 : index
    %c0_26 = arith.constant 0 : index
    %44 = vector.load %arg5[%c3, %c0_25, %c0_26] : memref<9x1x256xf32, #tpu.memory_space<vmem>>, vector<1x1x256xf32>
    %45 = vector.shape_cast %44 : vector<1x1x256xf32> to vector<1x256xf32>
    %46 = vector.broadcast %45 : vector<1x256xf32> to vector<32x256xf32>
    %47 = arith.mulf %43, %46 : vector<32x256xf32>
    %c3_27 = arith.constant 3 : index
    %c0_28 = arith.constant 0 : index
    %c0_29 = arith.constant 0 : index
    %48 = vector.load %arg4[%c3_27, %c0_28, %c0_29] : memref<9x32x1xf32, #tpu.memory_space<vmem>>, vector<1x32x1xf32>
    %49 = vector.shape_cast %48 : vector<1x32x1xf32> to vector<32x1xf32>
    %50 = vector.broadcast %49 : vector<32x1xf32> to vector<32x256xf32>
    %51 = arith.mulf %47, %50 : vector<32x256xf32>
    %52 = arith.addf %42, %51 : vector<32x256xf32>
    %c4 = arith.constant 4 : index
    %c0_30 = arith.constant 0 : index
    %c0_31 = arith.constant 0 : index
    %53 = vector.load %arg4[%c4, %c0_30, %c0_31] : memref<9x32x1xf32, #tpu.memory_space<vmem>>, vector<1x32x1xf32>
    %54 = vector.shape_cast %53 : vector<1x32x1xf32> to vector<32x1xf32>
    %55 = vector.broadcast %54 : vector<32x1xf32> to vector<32x256xf32>
    %56 = arith.mulf %11, %55 : vector<32x256xf32>
    %57 = arith.addf %52, %56 : vector<32x256xf32>
    %c255_i32 = arith.constant 255 : i32
    %58 = tpu.dynamic_rotate %11 by %c255_i32 dim 1 : vector<32x256xf32>, i32 -> vector<32x256xf32>
    %c5 = arith.constant 5 : index
    %c0_32 = arith.constant 0 : index
    %c0_33 = arith.constant 0 : index
    %59 = vector.load %arg5[%c5, %c0_32, %c0_33] : memref<9x1x256xf32, #tpu.memory_space<vmem>>, vector<1x1x256xf32>
    %60 = vector.shape_cast %59 : vector<1x1x256xf32> to vector<1x256xf32>
    %61 = vector.broadcast %60 : vector<1x256xf32> to vector<32x256xf32>
    %62 = arith.mulf %58, %61 : vector<32x256xf32>
    %c5_34 = arith.constant 5 : index
    %c0_35 = arith.constant 0 : index
    %c0_36 = arith.constant 0 : index
    %63 = vector.load %arg4[%c5_34, %c0_35, %c0_36] : memref<9x32x1xf32, #tpu.memory_space<vmem>>, vector<1x32x1xf32>
    %64 = vector.shape_cast %63 : vector<1x32x1xf32> to vector<32x1xf32>
    %65 = vector.broadcast %64 : vector<32x1xf32> to vector<32x256xf32>
    %66 = arith.mulf %62, %65 : vector<32x256xf32>
    %67 = arith.addf %57, %66 : vector<32x256xf32>
    %c241_i32 = arith.constant 241 : i32
    %68 = tpu.dynamic_rotate %11 by %c241_i32 dim 1 : vector<32x256xf32>, i32 -> vector<32x256xf32>
    %c6 = arith.constant 6 : index
    %c0_37 = arith.constant 0 : index
    %c0_38 = arith.constant 0 : index
    %69 = vector.load %arg5[%c6, %c0_37, %c0_38] : memref<9x1x256xf32, #tpu.memory_space<vmem>>, vector<1x1x256xf32>
    %70 = vector.shape_cast %69 : vector<1x1x256xf32> to vector<1x256xf32>
    %71 = vector.broadcast %70 : vector<1x256xf32> to vector<32x256xf32>
    %72 = arith.mulf %68, %71 : vector<32x256xf32>
    %c6_39 = arith.constant 6 : index
    %c0_40 = arith.constant 0 : index
    %c0_41 = arith.constant 0 : index
    %73 = vector.load %arg4[%c6_39, %c0_40, %c0_41] : memref<9x32x1xf32, #tpu.memory_space<vmem>>, vector<1x32x1xf32>
    %74 = vector.shape_cast %73 : vector<1x32x1xf32> to vector<32x1xf32>
    %75 = vector.broadcast %74 : vector<32x1xf32> to vector<32x256xf32>
    %76 = arith.mulf %72, %75 : vector<32x256xf32>
    %77 = arith.addf %67, %76 : vector<32x256xf32>
    %c240_i32 = arith.constant 240 : i32
    %78 = tpu.dynamic_rotate %11 by %c240_i32 dim 1 : vector<32x256xf32>, i32 -> vector<32x256xf32>
    %c7 = arith.constant 7 : index
    %c0_42 = arith.constant 0 : index
    %c0_43 = arith.constant 0 : index
    %79 = vector.load %arg5[%c7, %c0_42, %c0_43] : memref<9x1x256xf32, #tpu.memory_space<vmem>>, vector<1x1x256xf32>
    %80 = vector.shape_cast %79 : vector<1x1x256xf32> to vector<1x256xf32>
    %81 = vector.broadcast %80 : vector<1x256xf32> to vector<32x256xf32>
    %82 = arith.mulf %78, %81 : vector<32x256xf32>
    %c7_44 = arith.constant 7 : index
    %c0_45 = arith.constant 0 : index
    %c0_46 = arith.constant 0 : index
    %83 = vector.load %arg4[%c7_44, %c0_45, %c0_46] : memref<9x32x1xf32, #tpu.memory_space<vmem>>, vector<1x32x1xf32>
    %84 = vector.shape_cast %83 : vector<1x32x1xf32> to vector<32x1xf32>
    %85 = vector.broadcast %84 : vector<32x1xf32> to vector<32x256xf32>
    %86 = arith.mulf %82, %85 : vector<32x256xf32>
    %87 = arith.addf %77, %86 : vector<32x256xf32>
    %c239_i32 = arith.constant 239 : i32
    %88 = tpu.dynamic_rotate %11 by %c239_i32 dim 1 : vector<32x256xf32>, i32 -> vector<32x256xf32>
    %c8 = arith.constant 8 : index
    %c0_47 = arith.constant 0 : index
    %c0_48 = arith.constant 0 : index
    %89 = vector.load %arg5[%c8, %c0_47, %c0_48] : memref<9x1x256xf32, #tpu.memory_space<vmem>>, vector<1x1x256xf32>
    %90 = vector.shape_cast %89 : vector<1x1x256xf32> to vector<1x256xf32>
    %91 = vector.broadcast %90 : vector<1x256xf32> to vector<32x256xf32>
    %92 = arith.mulf %88, %91 : vector<32x256xf32>
    %c8_49 = arith.constant 8 : index
    %c0_50 = arith.constant 0 : index
    %c0_51 = arith.constant 0 : index
    %93 = vector.load %arg4[%c8_49, %c0_50, %c0_51] : memref<9x32x1xf32, #tpu.memory_space<vmem>>, vector<1x32x1xf32>
    %94 = vector.shape_cast %93 : vector<1x32x1xf32> to vector<32x1xf32>
    %95 = vector.broadcast %94 : vector<32x1xf32> to vector<32x256xf32>
    %96 = arith.mulf %92, %95 : vector<32x256xf32>
    %97 = arith.addf %87, %96 : vector<32x256xf32>
    %c0_52 = arith.constant 0 : index
    %c0_53 = arith.constant 0 : index
    %98 = vector.load %arg6[%c0_52, %c0_53] : memref<32x1xf32, #tpu.memory_space<vmem>>, vector<32x1xf32>
    %99 = vector.broadcast %98 : vector<32x1xf32> to vector<32x256xf32>
    %100 = arith.addf %97, %99 : vector<32x256xf32>
    %cst_54 = arith.constant 0.000000e+00 : f32
    %cst_55 = arith.constant 6.000000e+00 : f32
    %101 = vector.broadcast %cst_54 : f32 to vector<32x256xf32>
    %102 = arith.maximumf %101, %100 : vector<32x256xf32>
    %103 = vector.broadcast %cst_55 : f32 to vector<32x256xf32>
    %104 = arith.minimumf %103, %102 : vector<32x256xf32>
    %c0_56 = arith.constant 0 : index
    %c0_57 = arith.constant 0 : index
    %105 = vector.load %arg7[%c0_56, %c0_57] : memref<8x32xbf16, #tpu.memory_space<vmem>>, vector<8x32xbf16>
    %106 = arith.truncf %104 : vector<32x256xf32> to vector<32x256xbf16>
    %cst_58 = arith.constant dense<0.000000e+00> : vector<8x256xf32>
    %107 = tpu.matmul %105, %106, %cst_58 {dimension_numbers = #tpu.dot_dimension_numbers<[1], [0], [0], [1], [0, 0, 1, 1], [], []>} : vector<8x32xbf16>, vector<32x256xbf16>, vector<8x256xf32> -> vector<8x256xf32>
    %c0_59 = arith.constant 0 : index
    %c0_60 = arith.constant 0 : index
    %108 = vector.load %arg8[%c0_59, %c0_60] : memref<8x1xf32, #tpu.memory_space<vmem>>, vector<8x1xf32>
    %109 = vector.broadcast %108 : vector<8x1xf32> to vector<8x256xf32>
    %110 = arith.addf %107, %109 : vector<8x256xf32>
    %111 = arith.addf %110, %1 : vector<8x256xf32>
    %c0_61 = arith.constant 0 : index
    %c0_62 = arith.constant 0 : index
    %c0_63 = arith.constant 0 : index
    %112 = vector.load %arg9[%c0_61, %c0_62, %c0_63] : memref<1x8x256xf32, #tpu.memory_space<vmem>>, vector<1x8x256xf32>
    %113 = vector.shape_cast %112 : vector<1x8x256xf32> to vector<8x256xf32>
    %114 = vector.shape_cast %111 : vector<8x256xf32> to vector<1x8x256xf32>
    tpu.vector_store %arg9[%c0_61, %c0_62, %c0_63], %114 {strides = array<i32>} : memref<1x8x256xf32, #tpu.memory_space<vmem>>, vector<1x8x256xf32>,
    return
  }
  func.func @transform_0(%arg0: i32) -> (i32, i32, i32) {
    %c0_i32 = arith.constant 0 : i32
    %c0_i32_0 = arith.constant 0 : i32
    %c0_i32_1 = arith.constant 0 : i32
    return %arg0, %c0_i32, %c0_i32_0 : i32, i32, i32
  }
  func.func @transform_1(%arg0: i32) -> (i32, i32) {
    %c0_i32 = arith.constant 0 : i32
    %c0_i32_0 = arith.constant 0 : i32
    %c0_i32_1 = arith.constant 0 : i32
    return %c0_i32, %c0_i32_0 : i32, i32
  }
  func.func @transform_2(%arg0: i32) -> (i32, i32) {
    %c0_i32 = arith.constant 0 : i32
    %c0_i32_0 = arith.constant 0 : i32
    %c0_i32_1 = arith.constant 0 : i32
    return %c0_i32, %c0_i32_0 : i32, i32
  }
  func.func @transform_3(%arg0: i32) -> (i32, i32, i32) {
    %c0_i32 = arith.constant 0 : i32
    %c0_i32_0 = arith.constant 0 : i32
    %c0_i32_1 = arith.constant 0 : i32
    %c0_i32_2 = arith.constant 0 : i32
    return %c0_i32, %c0_i32_0, %c0_i32_1 : i32, i32, i32
  }
  func.func @transform_4(%arg0: i32) -> (i32, i32, i32) {
    %c0_i32 = arith.constant 0 : i32
    %c0_i32_0 = arith.constant 0 : i32
    %c0_i32_1 = arith.constant 0 : i32
    %c0_i32_2 = arith.constant 0 : i32
    return %c0_i32, %c0_i32_0, %c0_i32_1 : i32, i32, i32
  }
  func.func @transform_5(%arg0: i32) -> (i32, i32) {
    %c0_i32 = arith.constant 0 : i32
    %c0_i32_0 = arith.constant 0 : i32
    %c0_i32_1 = arith.constant 0 : i32
    return %c0_i32, %c0_i32_0 : i32, i32
  }
  func.func @transform_6(%arg0: i32) -> (i32, i32) {
    %c0_i32 = arith.constant 0 : i32
    %c0_i32_0 = arith.constant 0 : i32
    %c0_i32_1 = arith.constant 0 : i32
    return %c0_i32, %c0_i32_0 : i32, i32
  }
  func.func @transform_7(%arg0: i32) -> (i32, i32) {
    %c0_i32 = arith.constant 0 : i32
    %c0_i32_0 = arith.constant 0 : i32
    %c0_i32_1 = arith.constant 0 : i32
    return %c0_i32, %c0_i32_0 : i32, i32
  }
  func.func @transform_8(%arg0: i32) -> (i32, i32, i32) {
    %c0_i32 = arith.constant 0 : i32
    %c0_i32_0 = arith.constant 0 : i32
    %c0_i32_1 = arith.constant 0 : i32
    return %arg0, %c0_i32, %c0_i32_0 : i32, i32, i32
  }
}

</mosaic_0001>

<llo_original>
// kernel: tpu_custom_call.1
$region0: #{tpu_custom_call.1}
  #allocation0 [shape = 'u32[]', space=smem, size = 0x4, offset = 0x4, fixed_abs, tag = 'smem constant byte address 0x4 - core index']
  #allocation1 [shape = 'u32[144,128]{1,0:T(1,128)}', space=vmem, size = 0x12000, scoped, tag = 'internal scratch']
  %s0 = inlined_call_operand.vmem [shape: f32[2,8,256], index: 0, kind: input, shape index: {}]
  %s1 = inlined_call_operand.vmem [shape: bf16[32,8], index: 1, kind: input, shape index: {}]
  %s2 = inlined_call_operand.vmem [shape: f32[32,1], index: 2, kind: input, shape index: {}]
  %s3 = inlined_call_operand.vmem [shape: f32[9,32,1], index: 3, kind: input, shape index: {}]
  %s4 = inlined_call_operand.vmem [shape: f32[9,1,256], index: 4, kind: input, shape index: {}]
  %s5 = inlined_call_operand.vmem [shape: f32[32,1], index: 5, kind: input, shape index: {}]
  %s6 = inlined_call_operand.vmem [shape: bf16[8,32], index: 6, kind: input, shape index: {}]
  %s7 = inlined_call_operand.vmem [shape: f32[8,1], index: 7, kind: input, shape index: {}]
  %s8 = inlined_call_operand.hbm [shape: f32[2,8,256], index: 8, kind: output, shape index: {}]
  %s9 = sld [smem:[#allocation0]]
  $region65: #{tpu_custom_call.1} parent=0
    _
  %s11 = ssub.s32 1, %s9
  %s12 = scalar_select 0, %s11, %s9
  $region1: #{tpu_custom_call.1} parent=0
    #allocation2 [shape = 'u8[16384]{0}', space=vmem, size = 0x4000, scoped, tag = 'output window, operand 0']
    #allocation3 [shape = 's32[2]{0}', space=sflag, size = 0x8, scoped, tag = 'scoped memory for tpu_custom_call.1']
    %13 = vsyncpa [#allocation3], 0
    %s14 = scalar_lea.sflag [#allocation3], 1
    %15 = vsyncpa %s14, 0
    loop: start=0, step=1, limit=4
    $region2: #{tpu_custom_call.1} parent=1 // loop_pre_header
      _
    $region3: #{tpu_custom_call.1} parent=1 // loop_header
      %s17 = sphi 0, %s21
      %p18 = scmp.ge.s32.totalorder %s17, 4
      %s27 = sphi 0, %s29
      %s30 = sphi 0, %s27
      %s31 = sphi 0, %s30
      %s47 = sphi 0, %s31
      %s51 = sphi 0, %s51
      %s53 = sphi 0, %s51
      %s54 = sphi 0, %s53
      %s68 = sphi 0, %s54
      %s72 = sphi 0, %s72
      %s74 = sphi 0, %s72
      %s75 = sphi 0, %s74
      %s89 = sphi 0, %s75
      %s93 = sphi 0, %s93
      %s95 = sphi 0, %s93
      %s96 = sphi 0, %s95
      %s110 = sphi 0, %s96
      %s114 = sphi 0, %s114
      %s116 = sphi 0, %s114
      %s117 = sphi 0, %s116
      %s131 = sphi 0, %s117
      %s135 = sphi 0, %s135
      %s137 = sphi 0, %s135
      %s138 = sphi 0, %s137
      %s152 = sphi 0, %s138
      %s156 = sphi 0, %s156
      %s158 = sphi 0, %s156
      %s159 = sphi 0, %s158
      %s173 = sphi 0, %s159
      %s177 = sphi 0, %s177
      %s179 = sphi 0, %s177
      %s180 = sphi 0, %s179
      %s194 = sphi 0, %s180
      %s200 = sphi 0, %s202
      %s203 = sphi 0, %s200
      %s204 = sphi 0, %s203
      %s220 = sphi 0, %s204
    $region4: #{tpu_custom_call.1} parent=1 // loop_header_branch
      %20 = sbr.rel (%p18) target = $region8
    $region5: #{tpu_custom_call.1} parent=1 // loop_body
      %s22 = ssub.s32 %s17, 1
      %s23 = ssub.s32 %s17, 2
      %s24 = sadd.s32 %s17, 1
      %s25 = ssub.s32 %s17, %s24
      %p26 = scmp.eq.s32.totalorder %s25, 0
      %s28 = sadd.s32 %s27, 1
      %s29 = scalar_select %p26, %s27, %s28
      %p32 = pneg %p26
      %p33 = scmp.eq.s32.totalorder %s17, 1
      %p34 = por %p32, %p33
      %p35 = scmp.ne.s32.totalorder %s27, %s30
      %p36 = scmp.eq.s32.totalorder %s17, 0
      %p37 = por %p35, %p36
      %p38 = scmp.ne.s32.totalorder %s27, %s30
      %p39 = scmp.eq.s32.totalorder %s22, 1
      %p40 = por %p38, %p39
      %p41 = scmp.ne.s32.totalorder %s30, %s31
      %p42 = scmp.eq.s32.totalorder %s22, 0
      %p43 = por %p41, %p42
      %p44 = scmp.ne.s32.totalorder %s30, %s31
      %p45 = scmp.eq.s32.totalorder %s23, 1
      %p46 = por %p44, %p45
      %p48 = scmp.ne.s32.totalorder %s31, %s47
      %p49 = scmp.eq.s32.totalorder %s23, 0
      %p50 = por %p48, %p49
      %s52 = sadd.s32 %s51, 1
      %p55 = scmp.eq.s32.totalorder %s17, 1
      %p56 = scmp.ne.s32.totalorder %s51, %s53
      %p57 = scmp.eq.s32.totalorder %s17, 0
      %p58 = por %p56, %p57
      %p59 = scmp.ne.s32.totalorder %s51, %s53
      %p60 = scmp.eq.s32.totalorder %s22, 1
      %p61 = por %p59, %p60
      %p62 = scmp.ne.s32.totalorder %s53, %s54
      %p63 = scmp.eq.s32.totalorder %s22, 0
      %p64 = por %p62, %p63
      %p65 = scmp.ne.s32.totalorder %s53, %s54
      %p66 = scmp.eq.s32.totalorder %s23, 1
      %p67 = por %p65, %p66
      %p69 = scmp.ne.s32.totalorder %s54, %s68
      %p70 = scmp.eq.s32.totalorder %s23, 0
      %p71 = por %p69, %p70
      %s73 = sadd.s32 %s72, 1
      %p76 = scmp.eq.s32.totalorder %s17, 1
      %p77 = scmp.ne.s32.totalorder %s72, %s74
      %p78 = scmp.eq.s32.totalorder %s17, 0
      %p79 = por %p77, %p78
      %p80 = scmp.ne.s32.totalorder %s72, %s74
      %p81 = scmp.eq.s32.totalorder %s22, 1
      %p82 = por %p80, %p81
      %p83 = scmp.ne.s32.totalorder %s74, %s75
      %p84 = scmp.eq.s32.totalorder %s22, 0
      %p85 = por %p83, %p84
      %p86 = scmp.ne.s32.totalorder %s74, %s75
      %p87 = scmp.eq.s32.totalorder %s23, 1
      %p88 = por %p86, %p87
      %p90 = scmp.ne.s32.totalorder %s75, %s89
      %p91 = scmp.eq.s32.totalorder %s23, 0
      %p92 = por %p90, %p91
      %s94 = sadd.s32 %s93, 1
      %p97 = scmp.eq.s32.totalorder %s17, 1
      %p98 = scmp.ne.s32.totalorder %s93, %s95
      %p99 = scmp.eq.s32.totalorder %s17, 0
      %p100 = por %p98, %p99
      %p101 = scmp.ne.s32.totalorder %s93, %s95
      %p102 = scmp.eq.s32.totalorder %s22, 1
      %p103 = por %p101, %p102
      %p104 = scmp.ne.s32.totalorder %s95, %s96
      %p105 = scmp.eq.s32.totalorder %s22, 0
      %p106 = por %p104, %p105
      %p107 = scmp.ne.s32.totalorder %s95, %s96
      %p108 = scmp.eq.s32.totalorder %s23, 1
      %p109 = por %p107, %p108
      %p111 = scmp.ne.s32.totalorder %s96, %s110
      %p112 = scmp.eq.s32.totalorder %s23, 0
      %p113 = por %p111, %p112
      %s115 = sadd.s32 %s114, 1
      %p118 = scmp.eq.s32.totalorder %s17, 1
      %p119 = scmp.ne.s32.totalorder %s114, %s116
      %p120 = scmp.eq.s32.totalorder %s17, 0
      %p121 = por %p119, %p120
      %p122 = scmp.ne.s32.totalorder %s114, %s116
      %p123 = scmp.eq.s32.totalorder %s22, 1
      %p124 = por %p122, %p123
      %p125 = scmp.ne.s32.totalorder %s116, %s117
      %p126 = scmp.eq.s32.totalorder %s22, 0
      %p127 = por %p125, %p126
      %p128 = scmp.ne.s32.totalorder %s116, %s117
      %p129 = scmp.eq.s32.totalorder %s23, 1
      %p130 = por %p128, %p129
      %p132 = scmp.ne.s32.totalorder %s117, %s131
      %p133 = scmp.eq.s32.totalorder %s23, 0
      %p134 = por %p132, %p133
      %s136 = sadd.s32 %s135, 1
      %p139 = scmp.eq.s32.totalorder %s17, 1
      %p140 = scmp.ne.s32.totalorder %s135, %s137
      %p141 = scmp.eq.s32.totalorder %s17, 0
      %p142 = por %p140, %p141
      %p143 = scmp.ne.s32.totalorder %s135, %s137
      %p144 = scmp.eq.s32.totalorder %s22, 1
      %p145 = por %p143, %p144
      %p146 = scmp.ne.s32.totalorder %s137, %s138
      %p147 = scmp.eq.s32.totalorder %s22, 0
      %p148 = por %p146, %p147
      %p149 = scmp.ne.s32.totalorder %s137, %s138
      %p150 = scmp.eq.s32.totalorder %s23, 1
      %p151 = por %p149, %p150
      %p153 = scmp.ne.s32.totalorder %s138, %s152
      %p154 = scmp.eq.s32.totalorder %s23, 0
      %p155 = por %p153, %p154
      %s157 = sadd.s32 %s156, 1
      %p160 = scmp.eq.s32.totalorder %s17, 1
      %p161 = scmp.ne.s32.totalorder %s156, %s158
      %p162 = scmp.eq.s32.totalorder %s17, 0
      %p163 = por %p161, %p162
      %p164 = scmp.ne.s32.totalorder %s156, %s158
      %p165 = scmp.eq.s32.totalorder %s22, 1
      %p166 = por %p164, %p165
      %p167 = scmp.ne.s32.totalorder %s158, %s159
      %p168 = scmp.eq.s32.totalorder %s22, 0
      %p169 = por %p167, %p168
      %p170 = scmp.ne.s32.totalorder %s158, %s159
      %p171 = scmp.eq.s32.totalorder %s23, 1
      %p172 = por %p170, %p171
      %p174 = scmp.ne.s32.totalorder %s159, %s173
      %p175 = scmp.eq.s32.totalorder %s23, 0
      %p176 = por %p174, %p175
      %s178 = sadd.s32 %s177, 1
      %p181 = scmp.eq.s32.totalorder %s17, 1
      %p182 = scmp.ne.s32.totalorder %s177, %s179
      %p183 = scmp.eq.s32.totalorder %s17, 0
      %p184 = por %p182, %p183
      %p185 = scmp.ne.s32.totalorder %s177, %s179
      %p186 = scmp.eq.s32.totalorder %s22, 1
      %p187 = por %p185, %p186
      %p188 = scmp.ne.s32.totalorder %s179, %s180
      %p189 = scmp.eq.s32.totalorder %s22, 0
      %p190 = por %p188, %p189
      %p191 = scmp.ne.s32.totalorder %s179, %s180
      %p192 = scmp.eq.s32.totalorder %s23, 1
      %p193 = por %p191, %p192
      %p195 = scmp.ne.s32.totalorder %s180, %s194
      %p196 = scmp.eq.s32.totalorder %s23, 0
      %p197 = por %p195, %p196
      %s198 = ssub.s32 %s17, %s24
      %p199 = scmp.eq.s32.totalorder %s198, 0
      %s201 = sadd.s32 %s200, 1
      %s202 = scalar_select %p199, %s200, %s201
      %p205 = pneg %p199
      %p206 = scmp.eq.s32.totalorder %s17, 1
      %p207 = por %p205, %p206
      %p208 = scmp.ne.s32.totalorder %s200, %s203
      %p209 = scmp.eq.s32.totalorder %s17, 0
      %p210 = por %p208, %p209
      %p211 = scmp.ne.s32.totalorder %s200, %s203
      %p212 = scmp.eq.s32.totalorder %s22, 1
      %p213 = por %p211, %p212
      %p214 = scmp.ne.s32.totalorder %s203, %s204
      %p215 = scmp.eq.s32.totalorder %s22, 0
      %p216 = por %p214, %p215
      %p217 = scmp.ne.s32.totalorder %s203, %s204
      %p218 = scmp.eq.s32.totalorder %s23, 1
      %p219 = por %p217, %p218
      %p221 = scmp.ne.s32.totalorder %s204, %s220
      %p222 = scmp.eq.s32.totalorder %s23, 0
      %p223 = por %p221, %p222
      %p224 = scmp.le.s32.totalorder 1, %s17
      %p225 = scmp.lt.s32.totalorder %s17, 3
      %p226 = pnand %p224, %p225
      %p227 = pneg %p226
      // Predicated region
      $region9: #{tpu_custom_call.1} parent=5 // pred_check
        _
      $region10: #{tpu_custom_call.1} parent=5 // pred_check_branch
        %229 = sbr.rel (%p226) target = $region12
      $region11: #{tpu_custom_call.1} parent=5 // pred_region
        %s230 = ssub.s32 %s17, 1
        // Predicated region
        $region13: #{tpu_custom_call.1} parent=11 // pred_check
          %p231 = pneg %p64
        $region14: #{tpu_custom_call.1} parent=11 // pred_check_branch
          %233 = sbr.rel (%p231) target = $region16
        $region15: #{tpu_custom_call.1} parent=11 // pred_region
          _
        $region16: #{tpu_custom_call.1} parent=11 // pred_fallthru
          _
        // Predicated region
        $region17: #{tpu_custom_call.1} parent=11 // pred_check
          %p234 = pneg %p85
        $region18: #{tpu_custom_call.1} parent=11 // pred_check_branch
          %236 = sbr.rel (%p234) target = $region20
        $region19: #{tpu_custom_call.1} parent=11 // pred_region
          _
        $region20: #{tpu_custom_call.1} parent=11 // pred_fallthru
          _
        // Predicated region
        $region21: #{tpu_custom_call.1} parent=11 // pred_check
          %p237 = pneg %p106
        $region22: #{tpu_custom_call.1} parent=11 // pred_check_branch
          %239 = sbr.rel (%p237) target = $region24
        $region23: #{tpu_custom_call.1} parent=11 // pred_region
          _
        $region24: #{tpu_custom_call.1} parent=11 // pred_fallthru
          _
        // Predicated region
        $region25: #{tpu_custom_call.1} parent=11 // pred_check
          %p240 = pneg %p127
        $region26: #{tpu_custom_call.1} parent=11 // pred_check_branch
          %242 = sbr.rel (%p240) target = $region28
        $region27: #{tpu_custom_call.1} parent=11 // pred_region
          _
        $region28: #{tpu_custom_call.1} parent=11 // pred_fallthru
          _
        // Predicated region
        $region29: #{tpu_custom_call.1} parent=11 // pred_check
          %p243 = pneg %p148
        $region30: #{tpu_custom_call.1} parent=11 // pred_check_branch
          %245 = sbr.rel (%p243) target = $region32
        $region31: #{tpu_custom_call.1} parent=11 // pred_region
          _
        $region32: #{tpu_custom_call.1} parent=11 // pred_fallthru
          _
        // Predicated region
        $region33: #{tpu_custom_call.1} parent=11 // pred_check
          %p246 = pneg %p169
        $region34: #{tpu_custom_call.1} parent=11 // pred_check_branch
          %248 = sbr.rel (%p246) target = $region36
        $region35: #{tpu_custom_call.1} parent=11 // pred_region
          _
        $region36: #{tpu_custom_call.1} parent=11 // pred_fallthru
          _
        // Predicated region
        $region37: #{tpu_custom_call.1} parent=11 // pred_check
          %p249 = pneg %p190
        $region38: #{tpu_custom_call.1} parent=11 // pred_check_branch
          %251 = sbr.rel (%p249) target = $region40
        $region39: #{tpu_custom_call.1} parent=11 // pred_region
          _
        $region40: #{tpu_custom_call.1} parent=11 // pred_fallthru
          _
      $region12: #{tpu_custom_call.1} parent=5 // pred_fallthru
        _
      %p252 = scmp.lt.s32.totalorder %s17, 2
      // Predicated region
      $region41: #{tpu_custom_call.1} parent=5 // pred_check
        %p253 = pneg %p252
      $region42: #{tpu_custom_call.1} parent=5 // pred_check_branch
        %255 = sbr.rel (%p253) target = $region44
      $region43: #{tpu_custom_call.1} parent=5 // pred_region
        // Predicated region
        $region45: #{tpu_custom_call.1} parent=43 // pred_check
          %p256 = pneg %p37
        $region46: #{tpu_custom_call.1} parent=43 // pred_check_branch
          %258 = sbr.rel (%p256) target = $region48
        $region47: #{tpu_custom_call.1} parent=43 // pred_region
          %p259 = scmp.lt.s32.totalorder %s17, 1
          %s260 = scalar_select %p259, %s17, 1
          %s261 = smul.addr %s260, 2
          %s262 = smul.addr %s261, 8
          %s263 = scalar_lea.vmem %s0, %s262
        $region48: #{tpu_custom_call.1} parent=43 // pred_fallthru
          _
      $region44: #{tpu_custom_call.1} parent=5 // pred_fallthru
        _
      %p264 = scmp.le.s32.totalorder 1, %s17
      %p265 = scmp.lt.s32.totalorder %s17, 3
      %p266 = pnand %p264, %p265
      %p267 = pneg %p266
      // Predicated region
      $region49: #{tpu_custom_call.1} parent=5 // pred_check
        _
      $region50: #{tpu_custom_call.1} parent=5 // pred_check_branch
        %269 = sbr.rel (%p266) target = $region52
      $region51: #{tpu_custom_call.1} parent=5 // pred_region
        %s270 = ssub.s32 %s17, 1
        %p271 = scmp.lt.s32.totalorder %s22, 1
        %s272 = scalar_select %p271, %s22, 1
        %s273 = smul.addr %s272, 2
        %s274 = smul.addr %s273, 8
        %s275 = scalar_lea.vmem %s0, %s274
        %p276 = pneg %p43
        %p277 = pneg %p40
        %p278 = pneg %p64
        %p279 = pneg %p61
        %p280 = pneg %p85
        %p281 = pneg %p82
        %p282 = pneg %p106
        %p283 = pneg %p103
        %p284 = pneg %p127
        %p285 = pneg %p124
        %p286 = pneg %p148
        %p287 = pneg %p145
        %p288 = pneg %p169
        %p289 = pneg %p166
        %p290 = pneg %p190
        %p291 = pneg %p187
        %p292 = pneg %p216
        %p293 = pneg %p213
        %s294 = sand.u32 %s203, 1
        %s295 = scalar_lea.sflag [#allocation3], %s294
        %s296 = sand.u32 %s203, 1
        %s297 = smul.addr %s296, 16
        %s298 = scalar_lea.vmem [#allocation2], %s297
        %p299 = scmp.lt.s32.totalorder %s22, 1
        %s300 = scalar_select %p299, %s22, 1
        %s301 = smul.addr %s300, 2
        %s302 = smul.addr %s301, 8
        %s303 = scalar_lea.vmem %s0, %s302
        %v305 = vld [vmem:[%s303] sm:$0xff]
        %v306 = vld [vmem:[%s303 + $0x8] sm:$0xff]
        %v307 = vld [vmem:[%s1] sm:$0xf]
        %v308 = vld [vmem:[%s1 + $0x4] sm:$0xf]
        %v309 = vld [vmem:[%s1 + $0x8] sm:$0xf]
        %v310 = vld [vmem:[%s1 + $0xc] sm:$0xf]
        %v311 = vpack.c.bf16 %v305, %v305
        %v312 = vpack.c.bf16 %v306, %v306
        %v313 = vld [vmem:[%s2] sm:$0xff]
        %v314 = vld [vmem:[%s2 + $0x8] sm:$0xff]
        %v315 = vld [vmem:[%s2 + $0x10] sm:$0xff]
        %v316 = vld [vmem:[%s2 + $0x18] sm:$0xff]
        %318 = vset.pattern.permute.xlu0 0
        %319 = vperm.xlu0 %318, %v313
        %v320 = vpop.permute.xlu0 %319
        %323 = vset.pattern.permute.xlu0 0
        %324 = vperm.xlu0 %323, %v314
        %v325 = vpop.permute.xlu0 %324
        %328 = vset.pattern.permute.xlu0 0
        %329 = vperm.xlu0 %328, %v315
        %v330 = vpop.permute.xlu0 %329
        %333 = vset.pattern.permute.xlu0 0
        %334 = vperm.xlu0 %333, %v316
        %v335 = vpop.permute.xlu0 %334
        %v341 = vunpack.c.l.b16 %v307
        %v342 = vunpack.c.l.b16 %v308
        %v343 = vunpack.c.l.b16 %v309
        %v344 = vunpack.c.l.b16 %v310
        %v345 = vpack.c.b16 %v342, %v341
        %v346 = vpack.c.b16 %v344, %v343
        %vm347 = vcmask 64512
        %v349 = vsel %vm347, %v345, 0
        %v352 = vsel %vm347, %v346, 0
        %vm354 = vcmask 1043456
        %v356 = vsel %vm354, %v311, 0
        %v359 = vsel %vm354, %v312, 0
        %361 = vmatprep.subr.bf16.mxu0 %v359
        %362 = vmatpush1.bf16.msra.mxu0 %v356
        %363 = vmatprep.subr.bf16.mxu0 0
        %364 = vmatpush1.bf16.msra.mxu0 0
        %365 = vmatprep.subr.bf16.mxu0 0
        %366 = vmatpush1.bf16.msra.mxu0 0
        %367 = vmatprep.subr.bf16.mxu0 0
        %368 = vmatpush1.bf16.msra.mxu0 0
        %369 = vmatprep.subr.bf16.mxu0 0
        %370 = vmatpush1.bf16.msra.mxu0 0
        %371 = vmatprep.subr.bf16.mxu0 0
        %372 = vmatpush1.bf16.msra.mxu0 0
        %373 = vmatprep.subr.bf16.mxu0 0
        %374 = vmatpush1.bf16.msra.mxu0 0
        %375 = vmatprep.subr.bf16.mxu0 0
        %376 = vmatpush1.bf16.msra.mxu0 0
        %377 = vmatprep.subr.bf16.mxu0 0
        %378 = vmatpush1.bf16.msra.mxu0 0
        %379 = vmatprep.subr.bf16.mxu0 0
        %380 = vmatpush1.bf16.msra.mxu0 0
        %381 = vmatprep.subr.bf16.mxu0 0
        %382 = vmatpush1.bf16.msra.mxu0 0
        %383 = vmatprep.subr.bf16.mxu0 0
        %384 = vmatpush1.bf16.msra.mxu0 0
        %385 = vmatprep.subr.bf16.mxu0 0
        %386 = vmatpush1.bf16.msra.mxu0 0
        %387 = vmatprep.subr.bf16.mxu0 0
        %388 = vmatpush1.bf16.msra.mxu0 0
        %389 = vmatprep.subr.bf16.mxu0 0
        %390 = vmatpush1.bf16.msra.mxu0 0
        %391 = vmatprep.subr.bf16.mxu0 0
        %392 = vmatpush1.bf16.msra.mxu0 0
        %393 = vmatprep.mubr.bf16.mxu0 0
        %394 = vmatmul.mubr.bf16.gmra.mrb[0].mxu0 %v349
        %v395 = vpop.f32.mrb[0].mxu0
        %v396 = vadd.f32 %v320, %v395
        %v397 = vpop.f32.mrb[0].mxu0
        %v398 = vadd.f32 %v320, %v397
        %v399 = vpop.f32.mrb[0].mxu0
        %v400 = vadd.f32 %v325, %v399
        %v401 = vpop.f32.mrb[0].mxu0
        %v402 = vadd.f32 %v325, %v401
        %403 = vmatprep.mubr.bf16.mxu0 0
        %404 = vmatmul.mubr.bf16.gmra.mrb[0].mxu0 %v352
        %v405 = vpop.f32.mrb[0].mxu0
        %v406 = vadd.f32 %v330, %v405
        %v407 = vpop.f32.mrb[0].mxu0
        %v408 = vadd.f32 %v330, %v407
        %v409 = vpop.f32.mrb[0].mxu0
        %v410 = vadd.f32 %v335, %v409
        %v411 = vpop.f32.mrb[0].mxu0
        %v412 = vadd.f32 %v335, %v411
        %413 = vdwg.mxu0
        %v414 = vmax.f32 %v396, 0.0
        %v415 = vmax.f32 %v398, 0.0
        %v416 = vmax.f32 %v400, 0.0
        %v417 = vmax.f32 %v402, 0.0
        %v418 = vmax.f32 %v406, 0.0
        %v419 = vmax.f32 %v408, 0.0
        %v420 = vmax.f32 %v410, 0.0
        %v421 = vmax.f32 %v412, 0.0
        %v422 = vmin.f32 %v414, 6.0
        %v423 = vmin.f32 %v415, 6.0
        %v424 = vmin.f32 %v416, 6.0
        %v425 = vmin.f32 %v417, 6.0
        %v426 = vmin.f32 %v418, 6.0
        %v427 = vmin.f32 %v419, 6.0
        %v428 = vmin.f32 %v420, 6.0
        %v429 = vmin.f32 %v421, 6.0
        %430 = vrot.lane.b32.xlu0 %v422, 17
        %v431 = vpop.permute.xlu0 %430
        %432 = vrot.lane.b32.xlu0 %v424, 17
        %v433 = vpop.permute.xlu0 %432
        %434 = vrot.lane.b32.xlu0 %v426, 17
        %v435 = vpop.permute.xlu0 %434
        %436 = vrot.lane.b32.xlu0 %v428, 17
        %v437 = vpop.permute.xlu0 %436
        %438 = vrot.lane.b32.xlu0 %v423, 17
        %v439 = vpop.permute.xlu0 %438
        %440 = vrot.lane.b32.xlu0 %v425, 17
        %v441 = vpop.permute.xlu0 %440
        %442 = vrot.lane.b32.xlu0 %v427, 17
        %v443 = vpop.permute.xlu0 %442
        %444 = vrot.lane.b32.xlu0 %v429, 17
        %v445 = vpop.permute.xlu0 %444
        %v446 = vlaneseq
        %v447 = vand.u32 %v446, 127
        %vm448 = vcmp.lt.s32.totalorder %v447, 17
        %v449 = vsel %vm448, %v431, %v439
        %v450 = vsel %vm448, %v433, %v441
        %v451 = vsel %vm448, %v435, %v443
        %v452 = vsel %vm448, %v437, %v445
        %v453 = vsel %vm448, %v439, %v431
        %v454 = vsel %vm448, %v441, %v433
        %v455 = vsel %vm448, %v443, %v435
        %v456 = vsel %vm448, %v445, %v437
        %v457 = vld [vmem:[%s4] sm:$0x3]
        %v459 = vlaneseq
        %v460 = vshrl.u32 %v459, 7
        %v461 = vsub.s32 0, %v460
        %v462 = vrot.slane %v457, %v461
        %v463 = vlaneseq
        %v464 = vshrl.u32 %v463, 7
        %v465 = vsub.s32 1, %v464
        %v466 = vrot.slane %v457, %v465
        %v469 = vmul.f32 %v453, %v462
        %v470 = vmul.f32 %v449, %v466
        %v471 = vmul.f32 %v454, %v462
        %v472 = vmul.f32 %v450, %v466
        %v473 = vmul.f32 %v455, %v462
        %v474 = vmul.f32 %v451, %v466
        %v475 = vmul.f32 %v456, %v462
        %v476 = vmul.f32 %v452, %v466
        %v477 = vld [vmem:[%s3] sm:$0xff]
        %v478 = vld [vmem:[%s3 + $0x8] sm:$0xff]
        %v479 = vld [vmem:[%s3 + $0x10] sm:$0xff]
        %v480 = vld [vmem:[%s3 + $0x18] sm:$0xff]
        %482 = vset.pattern.permute.xlu0 0
        %483 = vperm.xlu0 %482, %v477
        %v484 = vpop.permute.xlu0 %483
        %487 = vset.pattern.permute.xlu0 0
        %488 = vperm.xlu0 %487, %v478
        %v489 = vpop.permute.xlu0 %488
        %492 = vset.pattern.permute.xlu0 0
        %493 = vperm.xlu0 %492, %v479
        %v494 = vpop.permute.xlu0 %493
        %497 = vset.pattern.permute.xlu0 0
        %498 = vperm.xlu0 %497, %v480
        %v499 = vpop.permute.xlu0 %498
        %v501 = vmul.f32 %v469, %v484
        %v502 = vmul.f32 %v470, %v484
        %v503 = vmul.f32 %v471, %v489
        %v504 = vmul.f32 %v472, %v489
        %v505 = vmul.f32 %v473, %v494
        %v506 = vmul.f32 %v474, %v494
        %v507 = vmul.f32 %v475, %v499
        %v508 = vmul.f32 %v476, %v499
        %v509 = vadd.f32 %v501, 0.0
        %v510 = vadd.f32 %v502, 0.0
        %v511 = vadd.f32 %v503, 0.0
        %v512 = vadd.f32 %v504, 0.0
        %v513 = vadd.f32 %v505, 0.0
        %v514 = vadd.f32 %v506, 0.0
        %v515 = vadd.f32 %v507, 0.0
        %v516 = vadd.f32 %v508, 0.0
        %517 = vrot.lane.b32.xlu0 %v422, 16
        %v518 = vpop.permute.xlu0 %517
        %519 = vrot.lane.b32.xlu0 %v424, 16
        %v520 = vpop.permute.xlu0 %519
        %521 = vrot.lane.b32.xlu0 %v426, 16
        %v522 = vpop.permute.xlu0 %521
        %523 = vrot.lane.b32.xlu0 %v428, 16
        %v524 = vpop.permute.xlu0 %523
        %525 = vrot.lane.b32.xlu0 %v423, 16
        %v526 = vpop.permute.xlu0 %525
        %527 = vrot.lane.b32.xlu0 %v425, 16
        %v528 = vpop.permute.xlu0 %527
        %529 = vrot.lane.b32.xlu0 %v427, 16
        %v530 = vpop.permute.xlu0 %529
        %531 = vrot.lane.b32.xlu0 %v429, 16
        %v532 = vpop.permute.xlu0 %531
        %vm533 = vcmp.lt.s32.totalorder %v447, 16
        %v534 = vsel %vm533, %v518, %v526
        %v535 = vsel %vm533, %v520, %v528
        %v536 = vsel %vm533, %v522, %v530
        %v537 = vsel %vm533, %v524, %v532
        %v538 = vsel %vm533, %v526, %v518
        %v539 = vsel %vm533, %v528, %v520
        %v540 = vsel %vm533, %v530, %v522
        %v541 = vsel %vm533, %v532, %v524
        %s542 = scalar_lea.vmem %s4, 2
        %v543 = vld [vmem:[%s542] sm:$0x3]
        %v545 = vlaneseq
        %v546 = vshrl.u32 %v545, 7
        %v547 = vsub.s32 0, %v546
        %v548 = vrot.slane %v543, %v547
        %v549 = vlaneseq
        %v550 = vshrl.u32 %v549, 7
        %v551 = vsub.s32 1, %v550
        %v552 = vrot.slane %v543, %v551
        %v555 = vmul.f32 %v538, %v548
        %v556 = vmul.f32 %v534, %v552
        %v557 = vmul.f32 %v539, %v548
        %v558 = vmul.f32 %v535, %v552
        %v559 = vmul.f32 %v540, %v548
        %v560 = vmul.f32 %v536, %v552
        %v561 = vmul.f32 %v541, %v548
        %v562 = vmul.f32 %v537, %v552
        %s563 = scalar_lea.vmem %s3, 32
        %v564 = vld [vmem:[%s563] sm:$0xff]
        %v565 = vld [vmem:[%s563 + $0x8] sm:$0xff]
        %v566 = vld [vmem:[%s563 + $0x10] sm:$0xff]
        %v567 = vld [vmem:[%s563 + $0x18] sm:$0xff]
        %569 = vset.pattern.permute.xlu0 0
        %570 = vperm.xlu0 %569, %v564
        %v571 = vpop.permute.xlu0 %570
        %574 = vset.pattern.permute.xlu0 0
        %575 = vperm.xlu0 %574, %v565
        %v576 = vpop.permute.xlu0 %575
        %579 = vset.pattern.permute.xlu0 0
        %580 = vperm.xlu0 %579, %v566
        %v581 = vpop.permute.xlu0 %580
        %584 = vset.pattern.permute.xlu0 0
        %585 = vperm.xlu0 %584, %v567
        %v586 = vpop.permute.xlu0 %585
        %v588 = vmul.f32 %v555, %v571
        %v589 = vmul.f32 %v556, %v571
        %v590 = vmul.f32 %v557, %v576
        %v591 = vmul.f32 %v558, %v576
        %v592 = vmul.f32 %v559, %v581
        %v593 = vmul.f32 %v560, %v581
        %v594 = vmul.f32 %v561, %v586
        %v595 = vmul.f32 %v562, %v586
        %v596 = vadd.f32 %v509, %v588
        %v597 = vadd.f32 %v510, %v589
        %v598 = vadd.f32 %v511, %v590
        %v599 = vadd.f32 %v512, %v591
        %v600 = vadd.f32 %v513, %v592
        %v601 = vadd.f32 %v514, %v593
        %v602 = vadd.f32 %v515, %v594
        %v603 = vadd.f32 %v516, %v595
        %604 = vrot.lane.b32.xlu0 %v422, 15
        %v605 = vpop.permute.xlu0 %604
        %606 = vrot.lane.b32.xlu0 %v424, 15
        %v607 = vpop.permute.xlu0 %606
        %608 = vrot.lane.b32.xlu0 %v426, 15
        %v609 = vpop.permute.xlu0 %608
        %610 = vrot.lane.b32.xlu0 %v428, 15
        %v611 = vpop.permute.xlu0 %610
        %612 = vrot.lane.b32.xlu0 %v423, 15
        %v613 = vpop.permute.xlu0 %612
        %614 = vrot.lane.b32.xlu0 %v425, 15
        %v615 = vpop.permute.xlu0 %614
        %616 = vrot.lane.b32.xlu0 %v427, 15
        %v617 = vpop.permute.xlu0 %616
        %618 = vrot.lane.b32.xlu0 %v429, 15
        %v619 = vpop.permute.xlu0 %618
        %vm620 = vcmp.lt.s32.totalorder %v447, 15
        %v621 = vsel %vm620, %v605, %v613
        %v622 = vsel %vm620, %v607, %v615
        %v623 = vsel %vm620, %v609, %v617
        %v624 = vsel %vm620, %v611, %v619
        %v625 = vsel %vm620, %v613, %v605
        %v626 = vsel %vm620, %v615, %v607
        %v627 = vsel %vm620, %v617, %v609
        %v628 = vsel %vm620, %v619, %v611
        %s629 = scalar_lea.vmem %s4, 4
        %v630 = vld [vmem:[%s629] sm:$0x3]
        %v632 = vlaneseq
        %v633 = vshrl.u32 %v632, 7
        %v634 = vsub.s32 0, %v633
        %v635 = vrot.slane %v630, %v634
        %v636 = vlaneseq
        %v637 = vshrl.u32 %v636, 7
        %v638 = vsub.s32 1, %v637
        %v639 = vrot.slane %v630, %v638
        %v642 = vmul.f32 %v625, %v635
        %v643 = vmul.f32 %v621, %v639
        %v644 = vmul.f32 %v626, %v635
        %v645 = vmul.f32 %v622, %v639
        %v646 = vmul.f32 %v627, %v635
        %v647 = vmul.f32 %v623, %v639
        %v648 = vmul.f32 %v628, %v635
        %v649 = vmul.f32 %v624, %v639
        %s650 = scalar_lea.vmem %s3, 64
        %v651 = vld [vmem:[%s650] sm:$0xff]
        %v652 = vld [vmem:[%s650 + $0x8] sm:$0xff]
        %v653 = vld [vmem:[%s650 + $0x10] sm:$0xff]
        %v654 = vld [vmem:[%s650 + $0x18] sm:$0xff]
        %656 = vset.pattern.permute.xlu0 0
        %657 = vperm.xlu0 %656, %v651
        %v658 = vpop.permute.xlu0 %657
        %661 = vset.pattern.permute.xlu0 0
        %662 = vperm.xlu0 %661, %v652
        %v663 = vpop.permute.xlu0 %662
        %666 = vset.pattern.permute.xlu0 0
        %667 = vperm.xlu0 %666, %v653
        %v668 = vpop.permute.xlu0 %667
        %671 = vset.pattern.permute.xlu0 0
        %672 = vperm.xlu0 %671, %v654
        %v673 = vpop.permute.xlu0 %672
        %v675 = vmul.f32 %v642, %v658
        %v676 = vmul.f32 %v643, %v658
        %v677 = vmul.f32 %v644, %v663
        %v678 = vmul.f32 %v645, %v663
        %v679 = vmul.f32 %v646, %v668
        %v680 = vmul.f32 %v647, %v668
        %v681 = vmul.f32 %v648, %v673
        %v682 = vmul.f32 %v649, %v673
        %v683 = vadd.f32 %v596, %v675
        %v684 = vadd.f32 %v597, %v676
        %v685 = vadd.f32 %v598, %v677
        %v686 = vadd.f32 %v599, %v678
        %v687 = vadd.f32 %v600, %v679
        %v688 = vadd.f32 %v601, %v680
        %v689 = vadd.f32 %v602, %v681
        %v690 = vadd.f32 %v603, %v682
        %691 = vrot.lane.b32.xlu0 %v422, 1
        %v692 = vpop.permute.xlu0 %691
        %693 = vrot.lane.b32.xlu0 %v424, 1
        %v694 = vpop.permute.xlu0 %693
        %695 = vrot.lane.b32.xlu0 %v426, 1
        %v696 = vpop.permute.xlu0 %695
        %697 = vrot.lane.b32.xlu0 %v428, 1
        %v698 = vpop.permute.xlu0 %697
        %699 = vrot.lane.b32.xlu0 %v423, 1
        %v700 = vpop.permute.xlu0 %699
        %701 = vrot.lane.b32.xlu0 %v425, 1
        %v702 = vpop.permute.xlu0 %701
        %703 = vrot.lane.b32.xlu0 %v427, 1
        %v704 = vpop.permute.xlu0 %703
        %705 = vrot.lane.b32.xlu0 %v429, 1
        %v706 = vpop.permute.xlu0 %705
        %vm707 = vcmp.lt.s32.totalorder %v447, 1
        %v708 = vsel %vm707, %v692, %v700
        %v709 = vsel %vm707, %v694, %v702
        %v710 = vsel %vm707, %v696, %v704
        %v711 = vsel %vm707, %v698, %v706
        %v712 = vsel %vm707, %v700, %v692
        %v713 = vsel %vm707, %v702, %v694
        %v714 = vsel %vm707, %v704, %v696
        %v715 = vsel %vm707, %v706, %v698
        %s716 = scalar_lea.vmem %s4, 6
        %v717 = vld [vmem:[%s716] sm:$0x3]
        %v719 = vlaneseq
        %v720 = vshrl.u32 %v719, 7
        %v721 = vsub.s32 0, %v720
        %v722 = vrot.slane %v717, %v721
        %v723 = vlaneseq
        %v724 = vshrl.u32 %v723, 7
        %v725 = vsub.s32 1, %v724
        %v726 = vrot.slane %v717, %v725
        %v729 = vmul.f32 %v712, %v722
        %v730 = vmul.f32 %v708, %v726
        %v731 = vmul.f32 %v713, %v722
        %v732 = vmul.f32 %v709, %v726
        %v733 = vmul.f32 %v714, %v722
        %v734 = vmul.f32 %v710, %v726
        %v735 = vmul.f32 %v715, %v722
        %v736 = vmul.f32 %v711, %v726
        %s737 = scalar_lea.vmem %s3, 96
        %v738 = vld [vmem:[%s737] sm:$0xff]
        %v739 = vld [vmem:[%s737 + $0x8] sm:$0xff]
        %v740 = vld [vmem:[%s737 + $0x10] sm:$0xff]
        %v741 = vld [vmem:[%s737 + $0x18] sm:$0xff]
        %743 = vset.pattern.permute.xlu0 0
        %744 = vperm.xlu0 %743, %v738
        %v745 = vpop.permute.xlu0 %744
        %748 = vset.pattern.permute.xlu0 0
        %749 = vperm.xlu0 %748, %v739
        %v750 = vpop.permute.xlu0 %749
        %753 = vset.pattern.permute.xlu0 0
        %754 = vperm.xlu0 %753, %v740
        %v755 = vpop.permute.xlu0 %754
        %758 = vset.pattern.permute.xlu0 0
        %759 = vperm.xlu0 %758, %v741
        %v760 = vpop.permute.xlu0 %759
        %v762 = vmul.f32 %v729, %v745
        %v763 = vmul.f32 %v730, %v745
        %v764 = vmul.f32 %v731, %v750
        %v765 = vmul.f32 %v732, %v750
        %v766 = vmul.f32 %v733, %v755
        %v767 = vmul.f32 %v734, %v755
        %v768 = vmul.f32 %v735, %v760
        %v769 = vmul.f32 %v736, %v760
        %v770 = vadd.f32 %v683, %v762
        %v771 = vadd.f32 %v684, %v763
        %v772 = vadd.f32 %v685, %v764
        %v773 = vadd.f32 %v686, %v765
        %v774 = vadd.f32 %v687, %v766
        %v775 = vadd.f32 %v688, %v767
        %v776 = vadd.f32 %v689, %v768
        %v777 = vadd.f32 %v690, %v769
        %s778 = scalar_lea.vmem %s3, 128
        %v779 = vld [vmem:[%s778] sm:$0xff]
        %v780 = vld [vmem:[%s778 + $0x8] sm:$0xff]
        %v781 = vld [vmem:[%s778 + $0x10] sm:$0xff]
        %v782 = vld [vmem:[%s778 + $0x18] sm:$0xff]
        %784 = vset.pattern.permute.xlu0 0
        %785 = vperm.xlu0 %784, %v779
        %v786 = vpop.permute.xlu0 %785
        %789 = vset.pattern.permute.xlu0 0
        %790 = vperm.xlu0 %789, %v780
        %v791 = vpop.permute.xlu0 %790
        %794 = vset.pattern.permute.xlu0 0
        %795 = vperm.xlu0 %794, %v781
        %v796 = vpop.permute.xlu0 %795
        %799 = vset.pattern.permute.xlu0 0
        %800 = vperm.xlu0 %799, %v782
        %v801 = vpop.permute.xlu0 %800
        %v803 = vmul.f32 %v422, %v786
        %v804 = vmul.f32 %v423, %v786
        %v805 = vmul.f32 %v424, %v791
        %v806 = vmul.f32 %v425, %v791
        %v807 = vmul.f32 %v426, %v796
        %v808 = vmul.f32 %v427, %v796
        %v809 = vmul.f32 %v428, %v801
        %v810 = vmul.f32 %v429, %v801
        %v811 = vadd.f32 %v770, %v803
        %v812 = vadd.f32 %v771, %v804
        %v813 = vadd.f32 %v772, %v805
        %v814 = vadd.f32 %v773, %v806
        %v815 = vadd.f32 %v774, %v807
        %v816 = vadd.f32 %v775, %v808
        %v817 = vadd.f32 %v776, %v809
        %v818 = vadd.f32 %v777, %v810
        %819 = vrot.lane.b32.xlu0 %v422, 127
        %v820 = vpop.permute.xlu0 %819
        %821 = vrot.lane.b32.xlu0 %v424, 127
        %v822 = vpop.permute.xlu0 %821
        %823 = vrot.lane.b32.xlu0 %v426, 127
        %v824 = vpop.permute.xlu0 %823
        %825 = vrot.lane.b32.xlu0 %v428, 127
        %v826 = vpop.permute.xlu0 %825
        %827 = vrot.lane.b32.xlu0 %v423, 127
        %v828 = vpop.permute.xlu0 %827
        %829 = vrot.lane.b32.xlu0 %v425, 127
        %v830 = vpop.permute.xlu0 %829
        %831 = vrot.lane.b32.xlu0 %v427, 127
        %v832 = vpop.permute.xlu0 %831
        %833 = vrot.lane.b32.xlu0 %v429, 127
        %v834 = vpop.permute.xlu0 %833
        %vm835 = vcmp.lt.s32.totalorder %v447, 127
        %v836 = vsel %vm835, %v820, %v828
        %v837 = vsel %vm835, %v822, %v830
        %v838 = vsel %vm835, %v824, %v832
        %v839 = vsel %vm835, %v826, %v834
        %v840 = vsel %vm835, %v828, %v820
        %v841 = vsel %vm835, %v830, %v822
        %v842 = vsel %vm835, %v832, %v824
        %v843 = vsel %vm835, %v834, %v826
        %s844 = scalar_lea.vmem %s4, 10
        %v845 = vld [vmem:[%s844] sm:$0x3]
        %v847 = vlaneseq
        %v848 = vshrl.u32 %v847, 7
        %v849 = vsub.s32 0, %v848
        %v850 = vrot.slane %v845, %v849
        %v851 = vlaneseq
        %v852 = vshrl.u32 %v851, 7
        %v853 = vsub.s32 1, %v852
        %v854 = vrot.slane %v845, %v853
        %v857 = vmul.f32 %v836, %v850
        %v858 = vmul.f32 %v840, %v854
        %v859 = vmul.f32 %v837, %v850
        %v860 = vmul.f32 %v841, %v854
        %v861 = vmul.f32 %v838, %v850
        %v862 = vmul.f32 %v842, %v854
        %v863 = vmul.f32 %v839, %v850
        %v864 = vmul.f32 %v843, %v854
        %s865 = scalar_lea.vmem %s3, 160
        %v866 = vld [vmem:[%s865] sm:$0xff]
        %v867 = vld [vmem:[%s865 + $0x8] sm:$0xff]
        %v868 = vld [vmem:[%s865 + $0x10] sm:$0xff]
        %v869 = vld [vmem:[%s865 + $0x18] sm:$0xff]
        %871 = vset.pattern.permute.xlu0 0
        %872 = vperm.xlu0 %871, %v866
        %v873 = vpop.permute.xlu0 %872
        %876 = vset.pattern.permute.xlu0 0
        %877 = vperm.xlu0 %876, %v867
        %v878 = vpop.permute.xlu0 %877
        %881 = vset.pattern.permute.xlu0 0
        %882 = vperm.xlu0 %881, %v868
        %v883 = vpop.permute.xlu0 %882
        %886 = vset.pattern.permute.xlu0 0
        %887 = vperm.xlu0 %886, %v869
        %v888 = vpop.permute.xlu0 %887
        %v890 = vmul.f32 %v857, %v873
        %v891 = vmul.f32 %v858, %v873
        %v892 = vmul.f32 %v859, %v878
        %v893 = vmul.f32 %v860, %v878
        %v894 = vmul.f32 %v861, %v883
        %v895 = vmul.f32 %v862, %v883
        %v896 = vmul.f32 %v863, %v888
        %v897 = vmul.f32 %v864, %v888
        %v898 = vadd.f32 %v811, %v890
        %v899 = vadd.f32 %v812, %v891
        %v900 = vadd.f32 %v813, %v892
        %v901 = vadd.f32 %v814, %v893
        %v902 = vadd.f32 %v815, %v894
        %v903 = vadd.f32 %v816, %v895
        %v904 = vadd.f32 %v817, %v896
        %v905 = vadd.f32 %v818, %v897
        %906 = vrot.lane.b32.xlu0 %v422, 113
        %v907 = vpop.permute.xlu0 %906
        %908 = vrot.lane.b32.xlu0 %v424, 113
        %v909 = vpop.permute.xlu0 %908
        %910 = vrot.lane.b32.xlu0 %v426, 113
        %v911 = vpop.permute.xlu0 %910
        %912 = vrot.lane.b32.xlu0 %v428, 113
        %v913 = vpop.permute.xlu0 %912
        %914 = vrot.lane.b32.xlu0 %v423, 113
        %v915 = vpop.permute.xlu0 %914
        %916 = vrot.lane.b32.xlu0 %v425, 113
        %v917 = vpop.permute.xlu0 %916
        %918 = vrot.lane.b32.xlu0 %v427, 113
        %v919 = vpop.permute.xlu0 %918
        %920 = vrot.lane.b32.xlu0 %v429, 113
        %v921 = vpop.permute.xlu0 %920
        %vm922 = vcmp.lt.s32.totalorder %v447, 113
        %v923 = vsel %vm922, %v907, %v915
        %v924 = vsel %vm922, %v909, %v917
        %v925 = vsel %vm922, %v911, %v919
        %v926 = vsel %vm922, %v913, %v921
        %v927 = vsel %vm922, %v915, %v907
        %v928 = vsel %vm922, %v917, %v909
        %v929 = vsel %vm922, %v919, %v911
        %v930 = vsel %vm922, %v921, %v913
        %s931 = scalar_lea.vmem %s4, 12
        %v932 = vld [vmem:[%s931] sm:$0x3]
        %v934 = vlaneseq
        %v935 = vshrl.u32 %v934, 7
        %v936 = vsub.s32 0, %v935
        %v937 = vrot.slane %v932, %v936
        %v938 = vlaneseq
        %v939 = vshrl.u32 %v938, 7
        %v940 = vsub.s32 1, %v939
        %v941 = vrot.slane %v932, %v940
        %v944 = vmul.f32 %v923, %v937
        %v945 = vmul.f32 %v927, %v941
        %v946 = vmul.f32 %v924, %v937
        %v947 = vmul.f32 %v928, %v941
        %v948 = vmul.f32 %v925, %v937
        %v949 = vmul.f32 %v929, %v941
        %v950 = vmul.f32 %v926, %v937
        %v951 = vmul.f32 %v930, %v941
        %s952 = scalar_lea.vmem %s3, 192
        %v953 = vld [vmem:[%s952] sm:$0xff]
        %v954 = vld [vmem:[%s952 + $0x8] sm:$0xff]
        %v955 = vld [vmem:[%s952 + $0x10] sm:$0xff]
        %v956 = vld [vmem:[%s952 + $0x18] sm:$0xff]
        %958 = vset.pattern.permute.xlu0 0
        %959 = vperm.xlu0 %958, %v953
        %v960 = vpop.permute.xlu0 %959
        %963 = vset.pattern.permute.xlu0 0
        %964 = vperm.xlu0 %963, %v954
        %v965 = vpop.permute.xlu0 %964
        %968 = vset.pattern.permute.xlu0 0
        %969 = vperm.xlu0 %968, %v955
        %v970 = vpop.permute.xlu0 %969
        %973 = vset.pattern.permute.xlu0 0
        %974 = vperm.xlu0 %973, %v956
        %v975 = vpop.permute.xlu0 %974
        %v977 = vmul.f32 %v944, %v960
        %v978 = vmul.f32 %v945, %v960
        %v979 = vmul.f32 %v946, %v965
        %v980 = vmul.f32 %v947, %v965
        %v981 = vmul.f32 %v948, %v970
        %v982 = vmul.f32 %v949, %v970
        %v983 = vmul.f32 %v950, %v975
        %v984 = vmul.f32 %v951, %v975
        %v985 = vadd.f32 %v898, %v977
        %v986 = vadd.f32 %v899, %v978
        %v987 = vadd.f32 %v900, %v979
        %v988 = vadd.f32 %v901, %v980
        %v989 = vadd.f32 %v902, %v981
        %v990 = vadd.f32 %v903, %v982
        %v991 = vadd.f32 %v904, %v983
        %v992 = vadd.f32 %v905, %v984
        %993 = vrot.lane.b32.xlu0 %v422, 112
        %v994 = vpop.permute.xlu0 %993
        %995 = vrot.lane.b32.xlu0 %v424, 112
        %v996 = vpop.permute.xlu0 %995
        %997 = vrot.lane.b32.xlu0 %v426, 112
        %v998 = vpop.permute.xlu0 %997
        %999 = vrot.lane.b32.xlu0 %v428, 112
        %v1000 = vpop.permute.xlu0 %999
        %1001 = vrot.lane.b32.xlu0 %v423, 112
        %v1002 = vpop.permute.xlu0 %1001
        %1003 = vrot.lane.b32.xlu0 %v425, 112
        %v1004 = vpop.permute.xlu0 %1003
        %1005 = vrot.lane.b32.xlu0 %v427, 112
        %v1006 = vpop.permute.xlu0 %1005
        %1007 = vrot.lane.b32.xlu0 %v429, 112
        %v1008 = vpop.permute.xlu0 %1007
        %vm1009 = vcmp.lt.s32.totalorder %v447, 112
        %v1010 = vsel %vm1009, %v994, %v1002
        %v1011 = vsel %vm1009, %v996, %v1004
        %v1012 = vsel %vm1009, %v998, %v1006
        %v1013 = vsel %vm1009, %v1000, %v1008
        %v1014 = vsel %vm1009, %v1002, %v994
        %v1015 = vsel %vm1009, %v1004, %v996
        %v1016 = vsel %vm1009, %v1006, %v998
        %v1017 = vsel %vm1009, %v1008, %v1000
        %s1018 = scalar_lea.vmem %s4, 14
        %v1019 = vld [vmem:[%s1018] sm:$0x3]
        %v1021 = vlaneseq
        %v1022 = vshrl.u32 %v1021, 7
        %v1023 = vsub.s32 0, %v1022
        %v1024 = vrot.slane %v1019, %v1023
        %v1025 = vlaneseq
        %v1026 = vshrl.u32 %v1025, 7
        %v1027 = vsub.s32 1, %v1026
        %v1028 = vrot.slane %v1019, %v1027
        %v1031 = vmul.f32 %v1010, %v1024
        %v1032 = vmul.f32 %v1014, %v1028
        %v1033 = vmul.f32 %v1011, %v1024
        %v1034 = vmul.f32 %v1015, %v1028
        %v1035 = vmul.f32 %v1012, %v1024
        %v1036 = vmul.f32 %v1016, %v1028
        %v1037 = vmul.f32 %v1013, %v1024
        %v1038 = vmul.f32 %v1017, %v1028
        %s1039 = scalar_lea.vmem %s3, 224
        %v1040 = vld [vmem:[%s1039] sm:$0xff]
        %v1041 = vld [vmem:[%s1039 + $0x8] sm:$0xff]
        %v1042 = vld [vmem:[%s1039 + $0x10] sm:$0xff]
        %v1043 = vld [vmem:[%s1039 + $0x18] sm:$0xff]
        %1045 = vset.pattern.permute.xlu0 0
        %1046 = vperm.xlu0 %1045, %v1040
        %v1047 = vpop.permute.xlu0 %1046
        %1050 = vset.pattern.permute.xlu0 0
        %1051 = vperm.xlu0 %1050, %v1041
        %v1052 = vpop.permute.xlu0 %1051
        %1055 = vset.pattern.permute.xlu0 0
        %1056 = vperm.xlu0 %1055, %v1042
        %v1057 = vpop.permute.xlu0 %1056
        %1060 = vset.pattern.permute.xlu0 0
        %1061 = vperm.xlu0 %1060, %v1043
        %v1062 = vpop.permute.xlu0 %1061
        %v1064 = vmul.f32 %v1031, %v1047
        %v1065 = vmul.f32 %v1032, %v1047
        %v1066 = vmul.f32 %v1033, %v1052
        %v1067 = vmul.f32 %v1034, %v1052
        %v1068 = vmul.f32 %v1035, %v1057
        %v1069 = vmul.f32 %v1036, %v1057
        %v1070 = vmul.f32 %v1037, %v1062
        %v1071 = vmul.f32 %v1038, %v1062
        %v1072 = vadd.f32 %v985, %v1064
        %v1073 = vadd.f32 %v986, %v1065
        %v1074 = vadd.f32 %v987, %v1066
        %v1075 = vadd.f32 %v988, %v1067
        %v1076 = vadd.f32 %v989, %v1068
        %v1077 = vadd.f32 %v990, %v1069
        %v1078 = vadd.f32 %v991, %v1070
        %v1079 = vadd.f32 %v992, %v1071
        %1080 = vrot.lane.b32.xlu0 %v422, 111
        %v1081 = vpop.permute.xlu0 %1080
        %1082 = vrot.lane.b32.xlu0 %v424, 111
        %v1083 = vpop.permute.xlu0 %1082
        %1084 = vrot.lane.b32.xlu0 %v426, 111
        %v1085 = vpop.permute.xlu0 %1084
        %1086 = vrot.lane.b32.xlu0 %v428, 111
        %v1087 = vpop.permute.xlu0 %1086
        %1088 = vrot.lane.b32.xlu0 %v423, 111
        %v1089 = vpop.permute.xlu0 %1088
        %1090 = vrot.lane.b32.xlu0 %v425, 111
        %v1091 = vpop.permute.xlu0 %1090
        %1092 = vrot.lane.b32.xlu0 %v427, 111
        %v1093 = vpop.permute.xlu0 %1092
        %1094 = vrot.lane.b32.xlu0 %v429, 111
        %v1095 = vpop.permute.xlu0 %1094
        %vm1096 = vcmp.lt.s32.totalorder %v447, 111
        %v1097 = vsel %vm1096, %v1081, %v1089
        %v1098 = vsel %vm1096, %v1083, %v1091
        %v1099 = vsel %vm1096, %v1085, %v1093
        %v1100 = vsel %vm1096, %v1087, %v1095
        %v1101 = vsel %vm1096, %v1089, %v1081
        %v1102 = vsel %vm1096, %v1091, %v1083
        %v1103 = vsel %vm1096, %v1093, %v1085
        %v1104 = vsel %vm1096, %v1095, %v1087
        %s1105 = scalar_lea.vmem %s4, 16
        %v1106 = vld [vmem:[%s1105] sm:$0x3]
        %v1108 = vlaneseq
        %v1109 = vshrl.u32 %v1108, 7
        %v1110 = vsub.s32 0, %v1109
        %v1111 = vrot.slane %v1106, %v1110
        %v1112 = vlaneseq
        %v1113 = vshrl.u32 %v1112, 7
        %v1114 = vsub.s32 1, %v1113
        %v1115 = vrot.slane %v1106, %v1114
        %v1118 = vmul.f32 %v1097, %v1111
        %v1119 = vmul.f32 %v1101, %v1115
        %v1120 = vmul.f32 %v1098, %v1111
        %v1121 = vmul.f32 %v1102, %v1115
        %v1122 = vmul.f32 %v1099, %v1111
        %v1123 = vmul.f32 %v1103, %v1115
        %v1124 = vmul.f32 %v1100, %v1111
        %v1125 = vmul.f32 %v1104, %v1115
        %s1126 = scalar_lea.vmem %s3, 256
        %v1127 = vld [vmem:[%s1126] sm:$0xff]
        %v1128 = vld [vmem:[%s1126 + $0x8] sm:$0xff]
        %v1129 = vld [vmem:[%s1126 + $0x10] sm:$0xff]
        %v1130 = vld [vmem:[%s1126 + $0x18] sm:$0xff]
        %1132 = vset.pattern.permute.xlu0 0
        %1133 = vperm.xlu0 %1132, %v1127
        %v1134 = vpop.permute.xlu0 %1133
        %1137 = vset.pattern.permute.xlu0 0
        %1138 = vperm.xlu0 %1137, %v1128
        %v1139 = vpop.permute.xlu0 %1138
        %1142 = vset.pattern.permute.xlu0 0
        %1143 = vperm.xlu0 %1142, %v1129
        %v1144 = vpop.permute.xlu0 %1143
        %1147 = vset.pattern.permute.xlu0 0
        %1148 = vperm.xlu0 %1147, %v1130
        %v1149 = vpop.permute.xlu0 %1148
        %v1151 = vmul.f32 %v1118, %v1134
        %v1152 = vmul.f32 %v1119, %v1134
        %v1153 = vmul.f32 %v1120, %v1139
        %v1154 = vmul.f32 %v1121, %v1139
        %v1155 = vmul.f32 %v1122, %v1144
        %v1156 = vmul.f32 %v1123, %v1144
        %v1157 = vmul.f32 %v1124, %v1149
        %v1158 = vmul.f32 %v1125, %v1149
        %v1159 = vadd.f32 %v1072, %v1151
        %v1160 = vadd.f32 %v1073, %v1152
        %v1161 = vadd.f32 %v1074, %v1153
        %v1162 = vadd.f32 %v1075, %v1154
        %v1163 = vadd.f32 %v1076, %v1155
        %v1164 = vadd.f32 %v1077, %v1156
        %v1165 = vadd.f32 %v1078, %v1157
        %v1166 = vadd.f32 %v1079, %v1158
        %v1167 = vld [vmem:[%s5] sm:$0xff]
        %v1168 = vld [vmem:[%s5 + $0x8] sm:$0xff]
        %v1169 = vld [vmem:[%s5 + $0x10] sm:$0xff]
        %v1170 = vld [vmem:[%s5 + $0x18] sm:$0xff]
        %1172 = vset.pattern.permute.xlu0 0
        %1173 = vperm.xlu0 %1172, %v1167
        %v1174 = vpop.permute.xlu0 %1173
        %1177 = vset.pattern.permute.xlu0 0
        %1178 = vperm.xlu0 %1177, %v1168
        %v1179 = vpop.permute.xlu0 %1178
        %1182 = vset.pattern.permute.xlu0 0
        %1183 = vperm.xlu0 %1182, %v1169
        %v1184 = vpop.permute.xlu0 %1183
        %1187 = vset.pattern.permute.xlu0 0
        %1188 = vperm.xlu0 %1187, %v1170
        %v1189 = vpop.permute.xlu0 %1188
        %v1191 = vadd.f32 %v1159, %v1174
        %v1192 = vadd.f32 %v1160, %v1174
        %v1193 = vadd.f32 %v1161, %v1179
        %v1194 = vadd.f32 %v1162, %v1179
        %v1195 = vadd.f32 %v1163, %v1184
        %v1196 = vadd.f32 %v1164, %v1184
        %v1197 = vadd.f32 %v1165, %v1189
        %v1198 = vadd.f32 %v1166, %v1189
        %v1199 = vmax.f32 %v1191, 0.0
        %v1200 = vmax.f32 %v1192, 0.0
        %v1201 = vmax.f32 %v1193, 0.0
        %v1202 = vmax.f32 %v1194, 0.0
        %v1203 = vmax.f32 %v1195, 0.0
        %v1204 = vmax.f32 %v1196, 0.0
        %v1205 = vmax.f32 %v1197, 0.0
        %v1206 = vmax.f32 %v1198, 0.0
        %v1207 = vmin.f32 %v1199, 6.0
        %v1208 = vmin.f32 %v1200, 6.0
        %v1209 = vmin.f32 %v1201, 6.0
        %v1210 = vmin.f32 %v1202, 6.0
        %v1211 = vmin.f32 %v1203, 6.0
        %v1212 = vmin.f32 %v1204, 6.0
        %v1213 = vmin.f32 %v1205, 6.0
        %v1214 = vmin.f32 %v1206, 6.0
        %v1215 = vld [vmem:[%s6] sm:$0xf]
        %v1216 = vpack.c.bf16 %v1209, %v1207
        %v1217 = vpack.c.bf16 %v1210, %v1208
        %v1218 = vpack.c.bf16 %v1213, %v1211
        %v1219 = vpack.c.bf16 %v1214, %v1212
        %v1220 = vld [vmem:[%s7] sm:$0xff]
        %1222 = vset.pattern.permute.xlu0 0
        %1223 = vperm.xlu0 %1222, %v1220
        %v1224 = vpop.permute.xlu0 %1223
        %vm1226 = vcmask 261120
        %v1228 = vsel %vm1226, %v1215, 0
        %1230 = vmatprep.subr.bf16.mxu0 %v1217
        %1231 = vmatpush1.bf16.msra.mxu0 %v1216
        %1232 = vmatprep.subr.bf16.mxu0 %v1219
        %1233 = vmatpush1.bf16.msra.mxu0 %v1218
        %1234 = vmatprep.subr.bf16.mxu0 0
        %1235 = vmatpush1.bf16.msra.mxu0 0
        %1236 = vmatprep.subr.bf16.mxu0 0
        %1237 = vmatpush1.bf16.msra.mxu0 0
        %1238 = vmatprep.subr.bf16.mxu0 0
        %1239 = vmatpush1.bf16.msra.mxu0 0
        %1240 = vmatprep.subr.bf16.mxu0 0
        %1241 = vmatpush1.bf16.msra.mxu0 0
        %1242 = vmatprep.subr.bf16.mxu0 0
        %1243 = vmatpush1.bf16.msra.mxu0 0
        %1244 = vmatprep.subr.bf16.mxu0 0
        %1245 = vmatpush1.bf16.msra.mxu0 0
        %1246 = vmatprep.subr.bf16.mxu0 0
        %1247 = vmatpush1.bf16.msra.mxu0 0
        %1248 = vmatprep.subr.bf16.mxu0 0
        %1249 = vmatpush1.bf16.msra.mxu0 0
        %1250 = vmatprep.subr.bf16.mxu0 0
        %1251 = vmatpush1.bf16.msra.mxu0 0
        %1252 = vmatprep.subr.bf16.mxu0 0
        %1253 = vmatpush1.bf16.msra.mxu0 0
        %1254 = vmatprep.subr.bf16.mxu0 0
        %1255 = vmatpush1.bf16.msra.mxu0 0
        %1256 = vmatprep.subr.bf16.mxu0 0
        %1257 = vmatpush1.bf16.msra.mxu0 0
        %1258 = vmatprep.subr.bf16.mxu0 0
        %1259 = vmatpush1.bf16.msra.mxu0 0
        %1260 = vmatprep.subr.bf16.mxu0 0
        %1261 = vmatpush1.bf16.msra.mxu0 0
        %1262 = vmatprep.mubr.bf16.mxu0 0
        %1263 = vmatmul.mubr.bf16.gmra.mrb[0].mxu0 %v1228
        %v1264 = vpop.f32.mrb[0].mxu0
        %v1265 = vadd.f32 %v1224, %v1264
        %v1266 = vpop.f32.mrb[0].mxu0
        %v1267 = vadd.f32 %v1224, %v1266
        %v1268 = vpop.f32.mrb[0].mxu0
        %v1269 = vpop.f32.mrb[0].mxu0
        %1270 = vdwg.mxu0
        %v1271 = vadd.f32 %v1265, %v305
        %v1272 = vadd.f32 %v1267, %v306
        %1273 = vst [vmem:[%s298] sm:$0xff] %v1271
        %1274 = vst [vmem:[%s298 + $0x8] sm:$0xff] %v1272
        %s1275 = sand.u32 %s203, 1
        %s1276 = scalar_lea.sflag [#allocation3], %s1275
        %s1277 = sand.u32 %s203, 1
        %s1278 = smul.addr %s1277, 16
        %s1279 = scalar_lea.vmem [#allocation2], %s1278
        // Predicated region
        $region53: #{tpu_custom_call.1} parent=51 // pred_check
          %p1280 = pneg %p213
        $region54: #{tpu_custom_call.1} parent=51 // pred_check_branch
          %1282 = sbr.rel (%p1280) target = $region56
        $region55: #{tpu_custom_call.1} parent=51 // pred_region
          %s1284 = ssub.s32 256, 256
          %1285 = vsyncadd %s1276, %s1284
          %s1286 = smul.addr %s22, 2
          %s1287 = smul.addr %s1286, 128
          %s1288 = scalar_lea.hbm %s8, %s1287
          %s1290 = sshll.u32 %s1279, 4
          %s1291 = int_to_ptr.vmem [resolvable:$true] %s1290
          %1293 = dma.vmem_to_hbm [thread:$0]  %s1291, 256, %s1288, %s1276
        $region56: #{tpu_custom_call.1} parent=51 // pred_fallthru
          _
      $region52: #{tpu_custom_call.1} parent=5 // pred_fallthru
        _
      %p1294 = scmp.le.s32.totalorder 2, %s17
      // Predicated region
      $region57: #{tpu_custom_call.1} parent=5 // pred_check
        %p1295 = pneg %p1294
      $region58: #{tpu_custom_call.1} parent=5 // pred_check_branch
        %1297 = sbr.rel (%p1295) target = $region60
      $region59: #{tpu_custom_call.1} parent=5 // pred_region
        %s1298 = ssub.s32 %s17, 2
        // Predicated region
        $region61: #{tpu_custom_call.1} parent=59 // pred_check
          %p1299 = pneg %p219
        $region62: #{tpu_custom_call.1} parent=59 // pred_check_branch
          %1301 = sbr.rel (%p1299) target = $region64
        $region63: #{tpu_custom_call.1} parent=59 // pred_region
          %s1302 = sand.u32 %s204, 1
          %s1303 = scalar_lea.sflag [#allocation3], %s1302
          %s1304 = sand.u32 %s204, 1
          %s1305 = smul.addr %s1304, 16
          %s1306 = scalar_lea.vmem [#allocation2], %s1305
          %1307 = dma.done %s1303, 256
        $region64: #{tpu_custom_call.1} parent=59 // pred_fallthru
          _
      $region60: #{tpu_custom_call.1} parent=5 // pred_fallthru
        _
    $region6: #{tpu_custom_call.1} parent=1 // loop_footer
      %s21 = sadd.s32 1, %s17
    $region7: #{tpu_custom_call.1} parent=1 // loop_footer_branch
      %16 = sbr.rel target = $region3
    $region8: #{tpu_custom_call.1} parent=1 // loop_exit
      _
    %1308 = vsyncpa [#allocation3], 1
    %s1309 = scalar_lea.sflag [#allocation3], 1
    %1310 = vsyncpa %s1309, 1

</llo_original>
